<compile_context>
chip_gen: v6e
topology: v6e:2x2x1
jax: 0.10.0
libtpu: 0.0.40
codegen_flags: <defaults>
</compile_context>

<pallas_src>
import functools

import jax
import jax.numpy as jnp
from jax.experimental import pallas as pl
from jax.experimental.pallas import tpu as pltpu


def _round_up(x, m):
    return (x + m - 1) // m * m


# -------- kernel 1: Z1 = relu((A_hat @ X) @ W1 + b1) @ W2  (tiled over rows/k)
def _layer1_kernel(a_ref, x_ref, w1_ref, b1_ref, w2_ref, z_ref, acc_ref):
    k = pl.program_id(1)

    @pl.when(k == 0)
    def _():
        acc_ref[...] = jnp.zeros_like(acc_ref)

    # N^2 aggregation: bf16 inputs, f32 accumulation, output width = padded Cin
    acc_ref[...] += jnp.dot(a_ref[...], x_ref[...],
                            preferred_element_type=jnp.float32)

    @pl.when(k == pl.num_programs(1) - 1)
    def _():
        h = jnp.dot(acc_ref[...], w1_ref[...],
                    preferred_element_type=jnp.float32) + b1_ref[...]
        h = jnp.maximum(h, 0.0)                                   # ReLU
        # fuse layer-2 feature transform so kernel 2 only aggregates
        z = jnp.dot(h, w2_ref[...], preferred_element_type=jnp.float32)
        z_ref[...] = z.astype(z_ref.dtype)


# -------- kernel 2: out = log_softmax(A_hat @ Z1 + b2)  (tiled over rows/k)
def _make_layer2_kernel(num_classes):
    def kernel(a_ref, z_ref, b2_ref, out_ref, acc_ref):
        k = pl.program_id(1)

        @pl.when(k == 0)
        def _():
            acc_ref[...] = jnp.zeros_like(acc_ref)

        acc_ref[...] += jnp.dot(a_ref[...], z_ref[...],
                                preferred_element_type=jnp.float32)

        @pl.when(k == pl.num_programs(1) - 1)
        def _():
            logits = acc_ref[...] + b2_ref[...]
            # mask padded class lanes so they don't perturb max/sum (f32 math)
            col = jax.lax.broadcasted_iota(jnp.int32, logits.shape, 1)
            logits = jnp.where(col < num_classes, logits, -1e30)
            m = jnp.max(logits, axis=1, keepdims=True)
            s = logits - m
            lse = jnp.log(jnp.sum(jnp.exp(s), axis=1, keepdims=True))
            out_ref[...] = (s - lse).astype(out_ref.dtype)

    return kernel


# -------- glue: dense normalized adjacency (compute once per graph) ----------
def build_normalized_adjacency(edge_index, num_nodes):
    """A_hat = D^{-1/2}(A + I)D^{-1/2}. Binary adjacency: `.set` dedups
    parallel edges; max-with-eye makes the self-loop add idempotent (matches
    PyG for simple graphs; differs slightly if edge_index has duplicates)."""
    src, dst = edge_index[0], edge_index[1]
    adj = jnp.zeros((num_nodes, num_nodes), jnp.float32).at[dst, src].set(1.0)
    adj = jnp.maximum(adj, jnp.eye(num_nodes, dtype=jnp.float32))
    deg = jnp.sum(adj, axis=1)
    dinv = jnp.where(deg > 0, jax.lax.rsqrt(deg), 0.0)
    return dinv[:, None] * adj * dinv[None, :]


@jax.jit
def gnn_forward_dense(a_hat, x, w1, b1, w2, b2):
    n, in_c = x.shape
    hid = w1.shape[1]
    out_c = w2.shape[1]

    tile = 128 if n <= 256 else 256          # A_hat tile: fits every VMEM gen
    npad = _round_up(n, tile)
    cp = _round_up(in_c, 128)
    hp = _round_up(hid, 128)
    op = _round_up(out_c, 128)

    a_p = jnp.pad(a_hat, ((0, npad - n), (0, npad - n))).astype(jnp.bfloat16)
    x_p = jnp.pad(x, ((0, npad - n), (0, cp - in_c))).astype(jnp.bfloat16)
    w1_p = jnp.pad(w1.astype(jnp.float32), ((0, cp - in_c), (0, hp - hid)))
    b1_p = jnp.pad(b1.reshape(1, hid).astype(jnp.float32), ((0, 0), (0, hp - hid)))
    w2_p = jnp.pad(w2.astype(jnp.float32), ((0, hp - hid), (0, op - out_c)))
    b2_p = jnp.pad(b2.reshape(1, out_c).astype(jnp.float32), ((0, 0), (0, op - out_c)))

    grid = (npad // tile, npad // tile)
    cparams = pltpu.CompilerParams(dimension_semantics=("parallel", "arbitrary"))

    z1 = pl.pallas_call(
        _layer1_kernel,
        out_shape=jax.ShapeDtypeStruct((npad, op), jnp.bfloat16),
        grid_spec=pltpu.PrefetchScalarGridSpec(
            num_scalar_prefetch=0,
            grid=grid,
            in_specs=[
                pl.BlockSpec((tile, tile), lambda i, k: (i, k)),   # A_hat
                pl.BlockSpec((tile, cp), lambda i, k: (k, 0)),     # X
                pl.BlockSpec((cp, hp), lambda i, k: (0, 0)),       # W1
                pl.BlockSpec((1, hp), lambda i, k: (0, 0)),        # b1
                pl.BlockSpec((hp, op), lambda i, k: (0, 0)),       # W2
            ],
            out_specs=pl.BlockSpec((tile, op), lambda i, k: (i, 0)),
            scratch_shapes=[pltpu.VMEM((tile, cp), jnp.float32)],
        ),
        compiler_params=cparams,
        cost_estimate=pl.CostEstimate(
            flops=2 * npad * npad * cp + 2 * npad * cp * hp + 2 * npad * hp * op,
            transcendentals=0,
            bytes_accessed=(npad * npad + npad * cp + npad * op) * 2
                           + (cp * hp + hp * op) * 4),
    )(a_p, x_p, w1_p, b1_p, w2_p)

    out_p = pl.pallas_call(
        _make_layer2_kernel(out_c),
        out_shape=jax.ShapeDtypeStruct((npad, op), jnp.float32),
        grid_spec=pltpu.PrefetchScalarGridSpec(
            num_scalar_prefetch=0,
            grid=grid,
            in_specs=[
                pl.BlockSpec((tile, tile), lambda i, k: (i, k)),   # A_hat
                pl.BlockSpec((tile, op), lambda i, k: (k, 0)),     # Z1
                pl.BlockSpec((1, op), lambda i, k: (0, 0)),        # b2
            ],
            out_specs=pl.BlockSpec((tile, op), lambda i, k: (i, 0)),
            scratch_shapes=[pltpu.VMEM((tile, op), jnp.float32)],
        ),
        compiler_params=cparams,
        cost_estimate=pl.CostEstimate(
            flops=2 * npad * npad * op,
            transcendentals=npad * op,
            bytes_accessed=(npad * npad + npad * op) * 2 + npad * op * 4),
    )(a_p, z1, b2_p)

    return out_p[:n, :out_c]


def gnn_forward(x, edge_index, w1, b1, w2, b2):
    a_hat = build_normalized_adjacency(edge_index, x.shape[0])
    return gnn_forward_dense(a_hat, x, w1, b1, w2, b2)


def _gnn_reference(a_hat, x, w1, b1, w2, b2):
    h = jnp.maximum(a_hat @ (x @ w1) + b1, 0.0)
    z = a_hat @ (h @ w2) + b2
    return jax.nn.log_softmax(z, axis=1)


if __name__ == "__main__":
    # small shapes consistent with the module
    N, E = 8, 16                 # nodes, edges
    IN_C, HID_C, OUT_C = 4, 32, 8

    key = jax.random.PRNGKey(0)
    k_x, k_e, k_w1, k_b1, k_w2, k_b2 = jax.random.split(key, 6)

    x = jax.random.normal(k_x, (N, IN_C), dtype=jnp.float32)
    edge_index = jax.random.randint(k_e, (2, E), 0, N, dtype=jnp.int32)

    # deterministic synthetic parameters (GCNConv: weight [Cin, Cout], bias [Cout])
    w1 = jax.random.normal(k_w1, (IN_C, HID_C), dtype=jnp.float32) * 0.1
    b1 = jax.random.normal(k_b1, (1, HID_C), dtype=jnp.float32) * 0.01
    w2 = jax.random.normal(k_w2, (HID_C, OUT_C), dtype=jnp.float32) * 0.1
    b2 = jax.random.normal(k_b2, (1, OUT_C), dtype=jnp.float32) * 0.01

    a_hat = build_normalized_adjacency(edge_index, N)   # once per graph
    out = gnn_forward_dense(a_hat, x, w1, b1, w2, b2)
    jax.block_until_ready(out)

    # sanity 1: log_softmax rows must sum (in prob space) to 1
    assert out.shape == (N, OUT_C)
    assert jnp.allclose(jnp.sum(jnp.exp(out), axis=1), 1.0, atol=1e-4)

    # sanity 2: matches pure-JAX f32 reference within bf16 tolerance
    ref = _gnn_reference(a_hat, x, w1, b1, w2, b2)
    max_err = float(jnp.max(jnp.abs(out - ref)))
    assert max_err < 5e-2, f"max abs err vs reference = {max_err}"

    print("KERNEL_OK")
</pallas_src>

<mosaic_0001>
module attributes {stable_mosaic.version = 11 : i64} {
  func.func @_layer1_kernel(%arg0: i32, %arg1: i32, %arg2: memref<128x128xbf16, #tpu.memory_space<vmem>>, %arg3: memref<128x128xbf16, #tpu.memory_space<vmem>>, %arg4: memref<128x128xf32, #tpu.memory_space<vmem>>, %arg5: memref<1x128xf32, #tpu.memory_space<vmem>>, %arg6: memref<128x128xf32, #tpu.memory_space<vmem>>, %arg7: memref<128x128xbf16, #tpu.memory_space<vmem>>, %arg8: memref<128x128xf32, #tpu.memory_space<vmem>>) attributes {dimension_semantics = [#tpu.dimension_semantics<parallel>, #tpu.dimension_semantics<arbitrary>], iteration_bounds = array<i64: 1, 1>, scalar_prefetch = 0 : i64, scratch_operands = 1 : i64, tpu.core_type = #tpu.core_type<tc>, window_params = [{transform_indices = @transform_0, window_bounds = array<i64: 128, 128>}, {transform_indices = @transform_1, window_bounds = array<i64: 128, 128>}, {pipeline_mode = #tpu.pipeline_mode<synchronous>, transform_indices = @transform_2, window_bounds = array<i64: 128, 128>}, {pipeline_mode = #tpu.pipeline_mode<synchronous>, transform_indices = @transform_3, window_bounds = array<i64: 1, 128>}, {pipeline_mode = #tpu.pipeline_mode<synchronous>, transform_indices = @transform_4, window_bounds = array<i64: 128, 128>}, {transform_indices = @transform_5, window_bounds = array<i64: 128, 128>}]} {
    %c0_i32 = arith.constant 0 : i32
    %0 = arith.cmpi eq, %arg1, %c0_i32 : i32
    %1 = arith.extui %0 : i1 to i32
    %c0_i32_0 = arith.constant 0 : i32
    %2 = arith.cmpi ne, %1, %c0_i32_0 : i32
    scf.if %2 {
      %cst_10 = arith.constant 0.000000e+00 : f32
      %12 = vector.broadcast %cst_10 : f32 to vector<128x128xf32>
      %c0_11 = arith.constant 0 : index
      %c0_12 = arith.constant 0 : index
      %13 = vector.load %arg8[%c0_11, %c0_12] : memref<128x128xf32, #tpu.memory_space<vmem>>, vector<128x128xf32>
      tpu.vector_store %arg8[%c0_11, %c0_12], %12 {strides = array<i32>} : memref<128x128xf32, #tpu.memory_space<vmem>>, vector<128x128xf32>,
    } else {
    }
    %c0 = arith.constant 0 : index
    %c0_1 = arith.constant 0 : index
    %3 = vector.load %arg8[%c0, %c0_1] : memref<128x128xf32, #tpu.memory_space<vmem>>, vector<128x128xf32>
    %c0_2 = arith.constant 0 : index
    %c0_3 = arith.constant 0 : index
    %4 = vector.load %arg2[%c0_2, %c0_3] : memref<128x128xbf16, #tpu.memory_space<vmem>>, vector<128x128xbf16>
    %c0_4 = arith.constant 0 : index
    %c0_5 = arith.constant 0 : index
    %5 = vector.load %arg3[%c0_4, %c0_5] : memref<128x128xbf16, #tpu.memory_space<vmem>>, vector<128x128xbf16>
    %cst = arith.constant dense<0.000000e+00> : vector<128x128xf32>
    %6 = tpu.matmul %4, %5, %cst {dimension_numbers = #tpu.dot_dimension_numbers<[1], [0], [0], [1], [0, 0, 1, 1], [], []>} : vector<128x128xbf16>, vector<128x128xbf16>, vector<128x128xf32> -> vector<128x128xf32>
    %7 = arith.addf %3, %6 : vector<128x128xf32>
    %c0_6 = arith.constant 0 : index
    %c0_7 = arith.constant 0 : index
    %8 = vector.load %arg8[%c0_6, %c0_7] : memref<128x128xf32, #tpu.memory_space<vmem>>, vector<128x128xf32>
    tpu.vector_store %arg8[%c0_6, %c0_7], %7 {strides = array<i32>} : memref<128x128xf32, #tpu.memory_space<vmem>>, vector<128x128xf32>,
    %c0_i32_8 = arith.constant 0 : i32
    %9 = arith.cmpi eq, %arg1, %c0_i32_8 : i32
    %10 = arith.extui %9 : i1 to i32
    %c0_i32_9 = arith.constant 0 : i32
    %11 = arith.cmpi ne, %10, %c0_i32_9 : i32
    scf.if %11 {
      %c0_10 = arith.constant 0 : index
      %c0_11 = arith.constant 0 : index
      %12 = vector.load %arg8[%c0_10, %c0_11] : memref<128x128xf32, #tpu.memory_space<vmem>>, vector<128x128xf32>
      %c0_12 = arith.constant 0 : index
      %c0_13 = arith.constant 0 : index
      %13 = vector.load %arg4[%c0_12, %c0_13] : memref<128x128xf32, #tpu.memory_space<vmem>>, vector<128x128xf32>
      %cst_14 = arith.constant dense<0.000000e+00> : vector<128x128xf32>
      %14 = tpu.matmul %12, %13, %cst_14 {dimension_numbers = #tpu.dot_dimension_numbers<[1], [0], [0], [1], [0, 0, 1, 1], [], []>} : vector<128x128xf32>, vector<128x128xf32>, vector<128x128xf32> -> vector<128x128xf32>
      %c0_15 = arith.constant 0 : index
      %c0_16 = arith.constant 0 : index
      %15 = vector.load %arg5[%c0_15, %c0_16] : memref<1x128xf32, #tpu.memory_space<vmem>>, vector<1x128xf32>
      %16 = vector.broadcast %15 : vector<1x128xf32> to vector<128x128xf32>
      %17 = arith.addf %14, %16 : vector<128x128xf32>
      %cst_17 = arith.constant 0.000000e+00 : f32
      %18 = vector.broadcast %cst_17 : f32 to vector<128x128xf32>
      %19 = arith.maximumf %17, %18 : vector<128x128xf32>
      %c0_18 = arith.constant 0 : index
      %c0_19 = arith.constant 0 : index
      %20 = vector.load %arg6[%c0_18, %c0_19] : memref<128x128xf32, #tpu.memory_space<vmem>>, vector<128x128xf32>
      %cst_20 = arith.constant dense<0.000000e+00> : vector<128x128xf32>
      %21 = tpu.matmul %19, %20, %cst_20 {dimension_numbers = #tpu.dot_dimension_numbers<[1], [0], [0], [1], [0, 0, 1, 1], [], []>} : vector<128x128xf32>, vector<128x128xf32>, vector<128x128xf32> -> vector<128x128xf32>
      %22 = arith.truncf %21 : vector<128x128xf32> to vector<128x128xbf16>
      %c0_21 = arith.constant 0 : index
      %c0_22 = arith.constant 0 : index
      %23 = vector.load %arg7[%c0_21, %c0_22] : memref<128x128xbf16, #tpu.memory_space<vmem>>, vector<128x128xbf16>
      tpu.vector_store %arg7[%c0_21, %c0_22], %22 {strides = array<i32>} : memref<128x128xbf16, #tpu.memory_space<vmem>>, vector<128x128xbf16>,
    } else {
    }
    return
  }
  func.func @transform_0(%arg0: i32, %arg1: i32) -> (i32, i32) {
    %c0_i32 = arith.constant 0 : i32
    return %arg0, %arg1 : i32, i32
  }
  func.func @transform_1(%arg0: i32, %arg1: i32) -> (i32, i32) {
    %c0_i32 = arith.constant 0 : i32
    %c0_i32_0 = arith.constant 0 : i32
    return %arg1, %c0_i32 : i32, i32
  }
  func.func @transform_2(%arg0: i32, %arg1: i32) -> (i32, i32) {
    %c0_i32 = arith.constant 0 : i32
    %c0_i32_0 = arith.constant 0 : i32
    %c0_i32_1 = arith.constant 0 : i32
    return %c0_i32, %c0_i32_0 : i32, i32
  }
  func.func @transform_3(%arg0: i32, %arg1: i32) -> (i32, i32) {
    %c0_i32 = arith.constant 0 : i32
    %c0_i32_0 = arith.constant 0 : i32
    %c0_i32_1 = arith.constant 0 : i32
    return %c0_i32, %c0_i32_0 : i32, i32
  }
  func.func @transform_4(%arg0: i32, %arg1: i32) -> (i32, i32) {
    %c0_i32 = arith.constant 0 : i32
    %c0_i32_0 = arith.constant 0 : i32
    %c0_i32_1 = arith.constant 0 : i32
    return %c0_i32, %c0_i32_0 : i32, i32
  }
  func.func @transform_5(%arg0: i32, %arg1: i32) -> (i32, i32) {
    %c0_i32 = arith.constant 0 : i32
    %c0_i32_0 = arith.constant 0 : i32
    return %arg0, %c0_i32 : i32, i32
  }
}

module attributes {stable_mosaic.version = 11 : i64} {
  func.func @kernel(%arg0: i32, %arg1: i32, %arg2: memref<128x128xbf16, #tpu.memory_space<vmem>>, %arg3: memref<128x128xbf16, #tpu.memory_space<vmem>>, %arg4: memref<1x128xf32, #tpu.memory_space<vmem>>, %arg5: memref<128x128xf32, #tpu.memory_space<vmem>>, %arg6: memref<128x128xf32, #tpu.memory_space<vmem>>) attributes {dimension_semantics = [#tpu.dimension_semantics<parallel>, #tpu.dimension_semantics<arbitrary>], iteration_bounds = array<i64: 1, 1>, scalar_prefetch = 0 : i64, scratch_operands = 1 : i64, tpu.core_type = #tpu.core_type<tc>, window_params = [{transform_indices = @transform_0, window_bounds = array<i64: 128, 128>}, {transform_indices = @transform_1, window_bounds = array<i64: 128, 128>}, {pipeline_mode = #tpu.pipeline_mode<synchronous>, transform_indices = @transform_2, window_bounds = array<i64: 1, 128>}, {transform_indices = @transform_3, window_bounds = array<i64: 128, 128>}]} {
    %c0_i32 = arith.constant 0 : i32
    %0 = arith.cmpi eq, %arg1, %c0_i32 : i32
    %1 = arith.extui %0 : i1 to i32
    %c0_i32_0 = arith.constant 0 : i32
    %2 = arith.cmpi ne, %1, %c0_i32_0 : i32
    scf.if %2 {
      %cst_10 = arith.constant 0.000000e+00 : f32
      %12 = vector.broadcast %cst_10 : f32 to vector<128x128xf32>
      %c0_11 = arith.constant 0 : index
      %c0_12 = arith.constant 0 : index
      %13 = vector.load %arg6[%c0_11, %c0_12] : memref<128x128xf32, #tpu.memory_space<vmem>>, vector<128x128xf32>
      tpu.vector_store %arg6[%c0_11, %c0_12], %12 {strides = array<i32>} : memref<128x128xf32, #tpu.memory_space<vmem>>, vector<128x128xf32>,
    } else {
    }
    %c0 = arith.constant 0 : index
    %c0_1 = arith.constant 0 : index
    %3 = vector.load %arg6[%c0, %c0_1] : memref<128x128xf32, #tpu.memory_space<vmem>>, vector<128x128xf32>
    %c0_2 = arith.constant 0 : index
    %c0_3 = arith.constant 0 : index
    %4 = vector.load %arg2[%c0_2, %c0_3] : memref<128x128xbf16, #tpu.memory_space<vmem>>, vector<128x128xbf16>
    %c0_4 = arith.constant 0 : index
    %c0_5 = arith.constant 0 : index
    %5 = vector.load %arg3[%c0_4, %c0_5] : memref<128x128xbf16, #tpu.memory_space<vmem>>, vector<128x128xbf16>
    %cst = arith.constant dense<0.000000e+00> : vector<128x128xf32>
    %6 = tpu.matmul %4, %5, %cst {dimension_numbers = #tpu.dot_dimension_numbers<[1], [0], [0], [1], [0, 0, 1, 1], [], []>} : vector<128x128xbf16>, vector<128x128xbf16>, vector<128x128xf32> -> vector<128x128xf32>
    %7 = arith.addf %3, %6 : vector<128x128xf32>
    %c0_6 = arith.constant 0 : index
    %c0_7 = arith.constant 0 : index
    %8 = vector.load %arg6[%c0_6, %c0_7] : memref<128x128xf32, #tpu.memory_space<vmem>>, vector<128x128xf32>
    tpu.vector_store %arg6[%c0_6, %c0_7], %7 {strides = array<i32>} : memref<128x128xf32, #tpu.memory_space<vmem>>, vector<128x128xf32>,
    %c0_i32_8 = arith.constant 0 : i32
    %9 = arith.cmpi eq, %arg1, %c0_i32_8 : i32
    %10 = arith.extui %9 : i1 to i32
    %c0_i32_9 = arith.constant 0 : i32
    %11 = arith.cmpi ne, %10, %c0_i32_9 : i32
    scf.if %11 {
      %c0_10 = arith.constant 0 : index
      %c0_11 = arith.constant 0 : index
      %12 = vector.load %arg6[%c0_10, %c0_11] : memref<128x128xf32, #tpu.memory_space<vmem>>, vector<128x128xf32>
      %c0_12 = arith.constant 0 : index
      %c0_13 = arith.constant 0 : index
      %13 = vector.load %arg4[%c0_12, %c0_13] : memref<1x128xf32, #tpu.memory_space<vmem>>, vector<1x128xf32>
      %14 = vector.broadcast %13 : vector<1x128xf32> to vector<128x128xf32>
      %15 = arith.addf %12, %14 : vector<128x128xf32>
      %16 = tpu.iota {dimensions = array<i32: 1>} : vector<128x128xi32>
      %c8_i32 = arith.constant 8 : i32
      %17 = vector.broadcast %c8_i32 : i32 to vector<128x128xi32>
      %18 = arith.cmpi slt, %16, %17 : vector<128x128xi32>
      %cst_14 = arith.constant -1.000000e+30 : f32
      %19 = vector.broadcast %cst_14 : f32 to vector<128x128xf32>
      %20 = arith.select %18, %15, %19 : vector<128x128xi1>, vector<128x128xf32>
      %cst_15 = arith.constant dense<0xFF800000> : vector<128xf32>
      %21 = vector.multi_reduction <maximumf>, %20, %cst_15 [1] : vector<128x128xf32> to vector<128xf32>
      %22 = vector.shape_cast %21 : vector<128xf32> to vector<128x1xf32>
      %23 = vector.broadcast %22 : vector<128x1xf32> to vector<128x128xf32>
      %24 = arith.subf %20, %23 : vector<128x128xf32>
      %25 = math.exp %24 : vector<128x128xf32>
      %cst_16 = arith.constant dense<0.000000e+00> : vector<128xf32>
      %26 = vector.multi_reduction <add>, %25, %cst_16 [1] : vector<128x128xf32> to vector<128xf32>
      %27 = vector.shape_cast %26 : vector<128xf32> to vector<128x1xf32>
      %28 = math.log %27 : vector<128x1xf32>
      %29 = vector.broadcast %28 : vector<128x1xf32> to vector<128x128xf32>
      %30 = arith.subf %24, %29 : vector<128x128xf32>
      %c0_17 = arith.constant 0 : index
      %c0_18 = arith.constant 0 : index
      %31 = vector.load %arg5[%c0_17, %c0_18] : memref<128x128xf32, #tpu.memory_space<vmem>>, vector<128x128xf32>
      tpu.vector_store %arg5[%c0_17, %c0_18], %30 {strides = array<i32>} : memref<128x128xf32, #tpu.memory_space<vmem>>, vector<128x128xf32>,
    } else {
    }
    return
  }
  func.func @transform_0(%arg0: i32, %arg1: i32) -> (i32, i32) {
    %c0_i32 = arith.constant 0 : i32
    return %arg0, %arg1 : i32, i32
  }
  func.func @transform_1(%arg0: i32, %arg1: i32) -> (i32, i32) {
    %c0_i32 = arith.constant 0 : i32
    %c0_i32_0 = arith.constant 0 : i32
    return %arg1, %c0_i32 : i32, i32
  }
  func.func @transform_2(%arg0: i32, %arg1: i32) -> (i32, i32) {
    %c0_i32 = arith.constant 0 : i32
    %c0_i32_0 = arith.constant 0 : i32
    %c0_i32_1 = arith.constant 0 : i32
    return %c0_i32, %c0_i32_0 : i32, i32
  }
  func.func @transform_3(%arg0: i32, %arg1: i32) -> (i32, i32) {
    %c0_i32 = arith.constant 0 : i32
    %c0_i32_0 = arith.constant 0 : i32
    return %arg0, %c0_i32 : i32, i32
  }
}

</mosaic_0001>

<llo_original>
// kernel: gnn_forward_dense.3
$region0: #{gnn_forward_dense.3}
  #allocation0 [shape = 'u32[]', space=smem, size = 0x4, offset = 0x4, fixed_abs, tag = 'smem constant byte address 0x4 - core index']
  #allocation1 [shape = 'u32[144,128]{1,0:T(1,128)}', space=vmem, size = 0x12000, scoped, tag = 'internal scratch']
  #allocation2 [shape = 'f32[128,128]{1,0:T(8,128)}', space=vmem, size = 0x10000, scoped, tag = 'scratch operand']
  %s0 = inlined_call_operand.vmem [shape: bf16[128,128], index: 0, kind: input, shape index: {}]
  %s1 = inlined_call_operand.vmem [shape: bf16[128,128], index: 1, kind: input, shape index: {}]
  %s2 = inlined_call_operand.vmem [shape: f32[1,128], index: 2, kind: input, shape index: {}]
  %s3 = inlined_call_operand.vmem [shape: f32[128,128], index: 3, kind: output, shape index: {}]
  %s4 = sld [smem:[#allocation0]]
  $region30: #{gnn_forward_dense.3} parent=0
    _
  %s6 = ssub.s32 1, %s4
  %s7 = scalar_select 0, %s6, %s4
  // Predicated region
  $region2: #{gnn_forward_dense.3} parent=0 // pred_check
    _
  $region3: #{gnn_forward_dense.3} parent=0 // pred_check_branch
    %9 = sbr.rel (0) target = $region5
  $region4: #{gnn_forward_dense.3} parent=0 // pred_region
    _
  $region5: #{gnn_forward_dense.3} parent=0 // pred_fallthru
    _
  // Predicated region
  $region6: #{gnn_forward_dense.3} parent=0 // pred_check
    _
  $region7: #{gnn_forward_dense.3} parent=0 // pred_check_branch
    %11 = sbr.rel (0) target = $region9
  $region8: #{gnn_forward_dense.3} parent=0 // pred_region
    _
  $region9: #{gnn_forward_dense.3} parent=0 // pred_fallthru
    _
  // Predicated region
  $region10: #{gnn_forward_dense.3} parent=0 // pred_check
    _
  $region11: #{gnn_forward_dense.3} parent=0 // pred_check_branch
    %13 = sbr.rel (0) target = $region13
  $region12: #{gnn_forward_dense.3} parent=0 // pred_region
    _
  $region13: #{gnn_forward_dense.3} parent=0 // pred_fallthru
    _
  %p15 = scmp.eq.s32.totalorder 0, 0
  // Predicated region
  $region14: #{gnn_forward_dense.3} parent=0 // pred_check
    %p16 = pneg %p15
  $region15: #{gnn_forward_dense.3} parent=0 // pred_check_branch
    %18 = sbr.rel (%p16) target = $region17
  $region16: #{gnn_forward_dense.3} parent=0 // pred_region
    %19 = vst [vmem:[#allocation2] sm:$0xff] 0.0
    %20 = vst [vmem:[#allocation2 + $0x8] sm:$0xff] 0.0
    %21 = vst [vmem:[#allocation2 + $0x10] sm:$0xff] 0.0
    %22 = vst [vmem:[#allocation2 + $0x18] sm:$0xff] 0.0
    %23 = vst [vmem:[#allocation2 + $0x20] sm:$0xff] 0.0
    %24 = vst [vmem:[#allocation2 + $0x28] sm:$0xff] 0.0
    %25 = vst [vmem:[#allocation2 + $0x30] sm:$0xff] 0.0
    %26 = vst [vmem:[#allocation2 + $0x38] sm:$0xff] 0.0
    %27 = vst [vmem:[#allocation2 + $0x40] sm:$0xff] 0.0
    %28 = vst [vmem:[#allocation2 + $0x48] sm:$0xff] 0.0
    %29 = vst [vmem:[#allocation2 + $0x50] sm:$0xff] 0.0
    %30 = vst [vmem:[#allocation2 + $0x58] sm:$0xff] 0.0
    %31 = vst [vmem:[#allocation2 + $0x60] sm:$0xff] 0.0
    %32 = vst [vmem:[#allocation2 + $0x68] sm:$0xff] 0.0
    %33 = vst [vmem:[#allocation2 + $0x70] sm:$0xff] 0.0
    %34 = vst [vmem:[#allocation2 + $0x78] sm:$0xff] 0.0
  $region17: #{gnn_forward_dense.3} parent=0 // pred_fallthru
    _
  %v35 = vld [vmem:[#allocation2] sm:$0xff]
  %v36 = vld [vmem:[#allocation2 + $0x8] sm:$0xff]
  %v37 = vld [vmem:[#allocation2 + $0x10] sm:$0xff]
  %v38 = vld [vmem:[#allocation2 + $0x18] sm:$0xff]
  %v39 = vld [vmem:[#allocation2 + $0x20] sm:$0xff]
  %v40 = vld [vmem:[#allocation2 + $0x28] sm:$0xff]
  %v41 = vld [vmem:[#allocation2 + $0x30] sm:$0xff]
  %v42 = vld [vmem:[#allocation2 + $0x38] sm:$0xff]
  %v43 = vld [vmem:[#allocation2 + $0x40] sm:$0xff]
  %v44 = vld [vmem:[#allocation2 + $0x48] sm:$0xff]
  %v45 = vld [vmem:[#allocation2 + $0x50] sm:$0xff]
  %v46 = vld [vmem:[#allocation2 + $0x58] sm:$0xff]
  %v47 = vld [vmem:[#allocation2 + $0x60] sm:$0xff]
  %v48 = vld [vmem:[#allocation2 + $0x68] sm:$0xff]
  %v49 = vld [vmem:[#allocation2 + $0x70] sm:$0xff]
  %v50 = vld [vmem:[#allocation2 + $0x78] sm:$0xff]
  %v51 = vld [vmem:[%s0] sm:$0xf]
  %v52 = vld [vmem:[%s0 + $0x4] sm:$0xf]
  %v53 = vld [vmem:[%s0 + $0x8] sm:$0xf]
  %v54 = vld [vmem:[%s0 + $0xc] sm:$0xf]
  %v55 = vld [vmem:[%s0 + $0x10] sm:$0xf]
  %v56 = vld [vmem:[%s0 + $0x14] sm:$0xf]
  %v57 = vld [vmem:[%s0 + $0x18] sm:$0xf]
  %v58 = vld [vmem:[%s0 + $0x1c] sm:$0xf]
  %v59 = vld [vmem:[%s0 + $0x20] sm:$0xf]
  %v60 = vld [vmem:[%s0 + $0x24] sm:$0xf]
  %v61 = vld [vmem:[%s0 + $0x28] sm:$0xf]
  %v62 = vld [vmem:[%s0 + $0x2c] sm:$0xf]
  %v63 = vld [vmem:[%s0 + $0x30] sm:$0xf]
  %v64 = vld [vmem:[%s0 + $0x34] sm:$0xf]
  %v65 = vld [vmem:[%s0 + $0x38] sm:$0xf]
  %v66 = vld [vmem:[%s0 + $0x3c] sm:$0xf]
  %v67 = vld [vmem:[%s1] sm:$0xf]
  %v68 = vld [vmem:[%s1 + $0x4] sm:$0xf]
  %v69 = vld [vmem:[%s1 + $0x8] sm:$0xf]
  %v70 = vld [vmem:[%s1 + $0xc] sm:$0xf]
  %v71 = vld [vmem:[%s1 + $0x10] sm:$0xf]
  %v72 = vld [vmem:[%s1 + $0x14] sm:$0xf]
  %v73 = vld [vmem:[%s1 + $0x18] sm:$0xf]
  %v74 = vld [vmem:[%s1 + $0x1c] sm:$0xf]
  %v75 = vld [vmem:[%s1 + $0x20] sm:$0xf]
  %v76 = vld [vmem:[%s1 + $0x24] sm:$0xf]
  %v77 = vld [vmem:[%s1 + $0x28] sm:$0xf]
  %v78 = vld [vmem:[%s1 + $0x2c] sm:$0xf]
  %v79 = vld [vmem:[%s1 + $0x30] sm:$0xf]
  %v80 = vld [vmem:[%s1 + $0x34] sm:$0xf]
  %v81 = vld [vmem:[%s1 + $0x38] sm:$0xf]
  %v82 = vld [vmem:[%s1 + $0x3c] sm:$0xf]
  %v99 = vunpack.c.l.b16 %v51
  %v100 = vunpack.c.l.b16 %v52
  %v101 = vunpack.c.l.b16 %v53
  %v102 = vunpack.c.l.b16 %v54
  %v103 = vunpack.c.l.b16 %v55
  %v104 = vunpack.c.l.b16 %v56
  %v105 = vunpack.c.l.b16 %v57
  %v106 = vunpack.c.l.b16 %v58
  %v107 = vunpack.c.l.b16 %v59
  %v108 = vunpack.c.l.b16 %v60
  %v109 = vunpack.c.l.b16 %v61
  %v110 = vunpack.c.l.b16 %v62
  %v111 = vunpack.c.l.b16 %v63
  %v112 = vunpack.c.l.b16 %v64
  %v113 = vunpack.c.l.b16 %v65
  %v114 = vunpack.c.l.b16 %v66
  %v115 = vpack.c.b16 %v100, %v99
  %v116 = vpack.c.b16 %v102, %v101
  %v117 = vpack.c.b16 %v104, %v103
  %v118 = vpack.c.b16 %v106, %v105
  %v119 = vpack.c.b16 %v108, %v107
  %v120 = vpack.c.b16 %v110, %v109
  %v121 = vpack.c.b16 %v112, %v111
  %v122 = vpack.c.b16 %v114, %v113
  %v147 = vunpack.c.l.b16 %v67
  %v148 = vunpack.c.l.b16 %v68
  %v149 = vunpack.c.l.b16 %v69
  %v150 = vunpack.c.l.b16 %v70
  %v151 = vunpack.c.l.b16 %v71
  %v152 = vunpack.c.l.b16 %v72
  %v153 = vunpack.c.l.b16 %v73
  %v154 = vunpack.c.l.b16 %v74
  %v155 = vunpack.c.l.b16 %v75
  %v156 = vunpack.c.l.b16 %v76
  %v157 = vunpack.c.l.b16 %v77
  %v158 = vunpack.c.l.b16 %v78
  %v159 = vunpack.c.l.b16 %v79
  %v160 = vunpack.c.l.b16 %v80
  %v161 = vunpack.c.l.b16 %v81
  %v162 = vunpack.c.l.b16 %v82
  %v163 = vpack.c.b16 %v148, %v147
  %v164 = vpack.c.b16 %v150, %v149
  %v165 = vpack.c.b16 %v152, %v151
  %v166 = vpack.c.b16 %v154, %v153
  %v167 = vpack.c.b16 %v156, %v155
  %v168 = vpack.c.b16 %v158, %v157
  %v169 = vpack.c.b16 %v160, %v159
  %v170 = vpack.c.b16 %v162, %v161
  %179 = vmatprep.subr.bf16.mxu0 0
  %180 = vmatpush1.bf16.msra.mxu0 %v170
  %181 = vmatprep.subr.bf16.mxu0 0
  %182 = vmatpush1.bf16.msra.mxu0 %v169
  %183 = vmatprep.subr.bf16.mxu0 0
  %184 = vmatpush1.bf16.msra.mxu0 %v168
  %185 = vmatprep.subr.bf16.mxu0 0
  %186 = vmatpush1.bf16.msra.mxu0 %v167
  %187 = vmatprep.subr.bf16.mxu0 0
  %188 = vmatpush1.bf16.msra.mxu0 %v166
  %189 = vmatprep.subr.bf16.mxu0 0
  %190 = vmatpush1.bf16.msra.mxu0 %v165
  %191 = vmatprep.subr.bf16.mxu0 0
  %192 = vmatpush1.bf16.msra.mxu0 %v164
  %193 = vmatprep.subr.bf16.mxu0 0
  %194 = vmatpush1.bf16.msra.mxu0 %v163
  %195 = vmatprep.subr.bf16.mxu0 0
  %196 = vmatpush2.bf16.msra.mxu0 0
  %197 = vmatprep.subr.bf16.mxu0 0
  %198 = vmatpush2.bf16.msra.mxu0 0
  %199 = vmatprep.subr.bf16.mxu0 0
  %200 = vmatpush2.bf16.msra.mxu0 0
  %201 = vmatprep.subr.bf16.mxu0 0
  %202 = vmatpush2.bf16.msra.mxu0 0
  %203 = vmatprep.subr.bf16.mxu0 0
  %204 = vmatpush2.bf16.msra.mxu0 0
  %205 = vmatprep.subr.bf16.mxu0 0
  %206 = vmatpush2.bf16.msra.mxu0 0
  %207 = vmatprep.subr.bf16.mxu0 0
  %208 = vmatpush2.bf16.msra.mxu0 0
  %209 = vmatprep.subr.bf16.mxu0 0
  %210 = vmatpush2.bf16.msra.mxu0 0
  %211 = vmatprep.mubr.bf16.mxu0 0
  %212 = vmatmul.mubr.bf16.gmra.mxu0 %v115
  %v213 = vpop.f32.mrf.mxu0
  %v214 = vadd.f32 0.0, %v213
  %v215 = vpop.f32.mrf.mxu0
  %v216 = vpop.f32.mrf.mxu0
  %v217 = vadd.f32 0.0, %v216
  %v218 = vpop.f32.mrf.mxu0
  %219 = vmatprep.mubr.bf16.mxu0 0
  %220 = vmatmul.mubr.bf16.gmra.mxu0 %v116
  %v221 = vpop.f32.mrf.mxu0
  %v222 = vadd.f32 0.0, %v221
  %v223 = vpop.f32.mrf.mxu0
  %v224 = vpop.f32.mrf.mxu0
  %v225 = vadd.f32 0.0, %v224
  %v226 = vpop.f32.mrf.mxu0
  %227 = vmatprep.mubr.bf16.mxu0 0
  %228 = vmatmul.mubr.bf16.gmra.mxu0 %v117
  %v229 = vpop.f32.mrf.mxu0
  %v230 = vadd.f32 0.0, %v229
  %v231 = vpop.f32.mrf.mxu0
  %v232 = vpop.f32.mrf.mxu0
  %v233 = vadd.f32 0.0, %v232
  %v234 = vpop.f32.mrf.mxu0
  %235 = vmatprep.mubr.bf16.mxu0 0
  %236 = vmatmul.mubr.bf16.gmra.mxu0 %v118
  %v237 = vpop.f32.mrf.mxu0
  %v238 = vadd.f32 0.0, %v237
  %v239 = vpop.f32.mrf.mxu0
  %v240 = vpop.f32.mrf.mxu0
  %v241 = vadd.f32 0.0, %v240
  %v242 = vpop.f32.mrf.mxu0
  %243 = vmatprep.mubr.bf16.mxu0 0
  %244 = vmatmul.mubr.bf16.gmra.mxu0 %v119
  %v245 = vpop.f32.mrf.mxu0
  %v246 = vadd.f32 0.0, %v245
  %v247 = vpop.f32.mrf.mxu0
  %v248 = vpop.f32.mrf.mxu0
  %v249 = vadd.f32 0.0, %v248
  %v250 = vpop.f32.mrf.mxu0
  %251 = vmatprep.mubr.bf16.mxu0 0
  %252 = vmatmul.mubr.bf16.gmra.mxu0 %v120
  %v253 = vpop.f32.mrf.mxu0
  %v254 = vadd.f32 0.0, %v253
  %v255 = vpop.f32.mrf.mxu0
  %v256 = vpop.f32.mrf.mxu0
  %v257 = vadd.f32 0.0, %v256
  %v258 = vpop.f32.mrf.mxu0
  %259 = vmatprep.mubr.bf16.mxu0 0
  %260 = vmatmul.mubr.bf16.gmra.mxu0 %v121
  %v261 = vpop.f32.mrf.mxu0
  %v262 = vadd.f32 0.0, %v261
  %v263 = vpop.f32.mrf.mxu0
  %v264 = vpop.f32.mrf.mxu0
  %v265 = vadd.f32 0.0, %v264
  %v266 = vpop.f32.mrf.mxu0
  %267 = vmatprep.mubr.bf16.mxu0 0
  %268 = vmatmul.mubr.bf16.gmra.mxu0 %v122
  %v269 = vpop.f32.mrf.mxu0
  %v270 = vadd.f32 0.0, %v269
  %v271 = vpop.f32.mrf.mxu0
  %v272 = vpop.f32.mrf.mxu0
  %v273 = vadd.f32 0.0, %v272
  %v274 = vpop.f32.mrf.mxu0
  %275 = vdwg.mxu0
  %v276 = vadd.f32 %v35, %v214
  %v277 = vadd.f32 %v36, %v217
  %v278 = vadd.f32 %v37, %v222
  %v279 = vadd.f32 %v38, %v225
  %v280 = vadd.f32 %v39, %v230
  %v281 = vadd.f32 %v40, %v233
  %v282 = vadd.f32 %v41, %v238
  %v283 = vadd.f32 %v42, %v241
  %v284 = vadd.f32 %v43, %v246
  %v285 = vadd.f32 %v44, %v249
  %v286 = vadd.f32 %v45, %v254
  %v287 = vadd.f32 %v46, %v257
  %v288 = vadd.f32 %v47, %v262
  %v289 = vadd.f32 %v48, %v265
  %v290 = vadd.f32 %v49, %v270
  %v291 = vadd.f32 %v50, %v273
  %292 = vst [vmem:[#allocation2] sm:$0xff] %v276
  %293 = vst [vmem:[#allocation2 + $0x8] sm:$0xff] %v277
  %294 = vst [vmem:[#allocation2 + $0x10] sm:$0xff] %v278
  %295 = vst [vmem:[#allocation2 + $0x18] sm:$0xff] %v279
  %296 = vst [vmem:[#allocation2 + $0x20] sm:$0xff] %v280
  %297 = vst [vmem:[#allocation2 + $0x28] sm:$0xff] %v281
  %298 = vst [vmem:[#allocation2 + $0x30] sm:$0xff] %v282
  %299 = vst [vmem:[#allocation2 + $0x38] sm:$0xff] %v283
  %300 = vst [vmem:[#allocation2 + $0x40] sm:$0xff] %v284
  %301 = vst [vmem:[#allocation2 + $0x48] sm:$0xff] %v285
  %302 = vst [vmem:[#allocation2 + $0x50] sm:$0xff] %v286
  %303 = vst [vmem:[#allocation2 + $0x58] sm:$0xff] %v287
  %304 = vst [vmem:[#allocation2 + $0x60] sm:$0xff] %v288
  %305 = vst [vmem:[#allocation2 + $0x68] sm:$0xff] %v289
  %306 = vst [vmem:[#allocation2 + $0x70] sm:$0xff] %v290
  %307 = vst [vmem:[#allocation2 + $0x78] sm:$0xff] %v291
  // Predicated region
  $region18: #{gnn_forward_dense.3} parent=0 // pred_check
    %p308 = pneg %p15
  $region19: #{gnn_forward_dense.3} parent=0 // pred_check_branch
    %310 = sbr.rel (%p308) target = $region21
  $region20: #{gnn_forward_dense.3} parent=0 // pred_region
    %v311 = vld [vmem:[#allocation2] sm:$0xff]
    %v312 = vld [vmem:[#allocation2 + $0x8] sm:$0xff]
    %v313 = vld [vmem:[#allocation2 + $0x10] sm:$0xff]
    %v314 = vld [vmem:[#allocation2 + $0x18] sm:$0xff]
    %v315 = vld [vmem:[#allocation2 + $0x20] sm:$0xff]
    %v316 = vld [vmem:[#allocation2 + $0x28] sm:$0xff]
    %v317 = vld [vmem:[#allocation2 + $0x30] sm:$0xff]
    %v318 = vld [vmem:[#allocation2 + $0x38] sm:$0xff]
    %v319 = vld [vmem:[#allocation2 + $0x40] sm:$0xff]
    %v320 = vld [vmem:[#allocation2 + $0x48] sm:$0xff]
    %v321 = vld [vmem:[#allocation2 + $0x50] sm:$0xff]
    %v322 = vld [vmem:[#allocation2 + $0x58] sm:$0xff]
    %v323 = vld [vmem:[#allocation2 + $0x60] sm:$0xff]
    %v324 = vld [vmem:[#allocation2 + $0x68] sm:$0xff]
    %v325 = vld [vmem:[#allocation2 + $0x70] sm:$0xff]
    %v326 = vld [vmem:[#allocation2 + $0x78] sm:$0xff]
    %v327 = vld [vmem:[%s2] sm:$0x1]
    %v329 = vlaneseq
    %v330 = vshrl.u32 %v329, 7
    %v331 = vsub.s32 0, %v330
    %v332 = vrot.slane %v327, %v331
    %v334 = vadd.f32 %v311, %v332
    %v335 = vadd.f32 %v312, %v332
    %v336 = vadd.f32 %v313, %v332
    %v337 = vadd.f32 %v314, %v332
    %v338 = vadd.f32 %v315, %v332
    %v339 = vadd.f32 %v316, %v332
    %v340 = vadd.f32 %v317, %v332
    %v341 = vadd.f32 %v318, %v332
    %v342 = vadd.f32 %v319, %v332
    %v343 = vadd.f32 %v320, %v332
    %v344 = vadd.f32 %v321, %v332
    %v345 = vadd.f32 %v322, %v332
    %v346 = vadd.f32 %v323, %v332
    %v347 = vadd.f32 %v324, %v332
    %v348 = vadd.f32 %v325, %v332
    %v349 = vadd.f32 %v326, %v332
    %v350 = vlaneseq
    %v351 = vand.u32 %v350, 127
    %vm352 = vcmp.lt.s32.totalorder %v351, 8
    %v353 = vsel %vm352, %v334, -1e+30
    %v354 = vsel %vm352, %v335, -1e+30
    %v355 = vsel %vm352, %v336, -1e+30
    %v356 = vsel %vm352, %v337, -1e+30
    %v357 = vsel %vm352, %v338, -1e+30
    %v358 = vsel %vm352, %v339, -1e+30
    %v359 = vsel %vm352, %v340, -1e+30
    %v360 = vsel %vm352, %v341, -1e+30
    %v361 = vsel %vm352, %v342, -1e+30
    %v362 = vsel %vm352, %v343, -1e+30
    %v363 = vsel %vm352, %v344, -1e+30
    %v364 = vsel %vm352, %v345, -1e+30
    %v365 = vsel %vm352, %v346, -1e+30
    %v366 = vsel %vm352, %v347, -1e+30
    %v367 = vsel %vm352, %v348, -1e+30
    %v368 = vsel %vm352, %v349, -1e+30
    %369 = vmax.xlane.f32.xlu0 %v353
    %v370 = vpop.xlane.xlu0 %369
    %371 = vmax.xlane.f32.xlu0 %v354
    %v372 = vpop.xlane.xlu0 %371
    %373 = vmax.xlane.f32.xlu0 %v355
    %v374 = vpop.xlane.xlu0 %373
    %375 = vmax.xlane.f32.xlu0 %v356
    %v376 = vpop.xlane.xlu0 %375
    %377 = vmax.xlane.f32.xlu0 %v357
    %v378 = vpop.xlane.xlu0 %377
    %379 = vmax.xlane.f32.xlu0 %v358
    %v380 = vpop.xlane.xlu0 %379
    %381 = vmax.xlane.f32.xlu0 %v359
    %v382 = vpop.xlane.xlu0 %381
    %383 = vmax.xlane.f32.xlu0 %v360
    %v384 = vpop.xlane.xlu0 %383
    %385 = vmax.xlane.f32.xlu0 %v361
    %v386 = vpop.xlane.xlu0 %385
    %387 = vmax.xlane.f32.xlu0 %v362
    %v388 = vpop.xlane.xlu0 %387
    %389 = vmax.xlane.f32.xlu0 %v363
    %v390 = vpop.xlane.xlu0 %389
    %391 = vmax.xlane.f32.xlu0 %v364
    %v392 = vpop.xlane.xlu0 %391
    %393 = vmax.xlane.f32.xlu0 %v365
    %v394 = vpop.xlane.xlu0 %393
    %395 = vmax.xlane.f32.xlu0 %v366
    %v396 = vpop.xlane.xlu0 %395
    %397 = vmax.xlane.f32.xlu0 %v367
    %v398 = vpop.xlane.xlu0 %397
    %399 = vmax.xlane.f32.xlu0 %v368
    %v400 = vpop.xlane.xlu0 %399
    %v401 = vsub.f32 %v353, %v370
    %v402 = vsub.f32 %v354, %v372
    %v403 = vsub.f32 %v355, %v374
    %v404 = vsub.f32 %v356, %v376
    %v405 = vsub.f32 %v357, %v378
    %v406 = vsub.f32 %v358, %v380
    %v407 = vsub.f32 %v359, %v382
    %v408 = vsub.f32 %v360, %v384
    %v409 = vsub.f32 %v361, %v386
    %v410 = vsub.f32 %v362, %v388
    %v411 = vsub.f32 %v363, %v390
    %v412 = vsub.f32 %v364, %v392
    %v413 = vsub.f32 %v365, %v394
    %v414 = vsub.f32 %v366, %v396
    %v415 = vsub.f32 %v367, %v398
    %v416 = vsub.f32 %v368, %v400
    %v417 = vmul.f32 %v401, 1.442695
    %v418 = vpow.pop %v417
    %v419 = vmul.f32 %v402, 1.442695
    %v420 = vpow.pop %v419
    %v421 = vmul.f32 %v403, 1.442695
    %v422 = vpow.pop %v421
    %v423 = vmul.f32 %v404, 1.442695
    %v424 = vpow.pop %v423
    %v425 = vmul.f32 %v405, 1.442695
    %v426 = vpow.pop %v425
    %v427 = vmul.f32 %v406, 1.442695
    %v428 = vpow.pop %v427
    %v429 = vmul.f32 %v407, 1.442695
    %v430 = vpow.pop %v429
    %v431 = vmul.f32 %v408, 1.442695
    %v432 = vpow.pop %v431
    %v433 = vmul.f32 %v409, 1.442695
    %v434 = vpow.pop %v433
    %v435 = vmul.f32 %v410, 1.442695
    %v436 = vpow.pop %v435
    %v437 = vmul.f32 %v411, 1.442695
    %v438 = vpow.pop %v437
    %v439 = vmul.f32 %v412, 1.442695
    %v440 = vpow.pop %v439
    %v441 = vmul.f32 %v413, 1.442695
    %v442 = vpow.pop %v441
    %v443 = vmul.f32 %v414, 1.442695
    %v444 = vpow.pop %v443
    %v445 = vmul.f32 %v415, 1.442695
    %v446 = vpow.pop %v445
    %v447 = vmul.f32 %v416, 1.442695
    %v448 = vpow.pop %v447
    %449 = vadd.xlane.f32.xlu0 %v418
    %v450 = vpop.xlane.xlu0 %449
    %451 = vadd.xlane.f32.xlu0 %v420
    %v452 = vpop.xlane.xlu0 %451
    %453 = vadd.xlane.f32.xlu0 %v422
    %v454 = vpop.xlane.xlu0 %453
    %455 = vadd.xlane.f32.xlu0 %v424
    %v456 = vpop.xlane.xlu0 %455
    %457 = vadd.xlane.f32.xlu0 %v426
    %v458 = vpop.xlane.xlu0 %457
    %459 = vadd.xlane.f32.xlu0 %v428
    %v460 = vpop.xlane.xlu0 %459
    %461 = vadd.xlane.f32.xlu0 %v430
    %v462 = vpop.xlane.xlu0 %461
    %463 = vadd.xlane.f32.xlu0 %v432
    %v464 = vpop.xlane.xlu0 %463
    %465 = vadd.xlane.f32.xlu0 %v434
    %v466 = vpop.xlane.xlu0 %465
    %467 = vadd.xlane.f32.xlu0 %v436
    %v468 = vpop.xlane.xlu0 %467
    %469 = vadd.xlane.f32.xlu0 %v438
    %v470 = vpop.xlane.xlu0 %469
    %471 = vadd.xlane.f32.xlu0 %v440
    %v472 = vpop.xlane.xlu0 %471
    %473 = vadd.xlane.f32.xlu0 %v442
    %v474 = vpop.xlane.xlu0 %473
    %475 = vadd.xlane.f32.xlu0 %v444
    %v476 = vpop.xlane.xlu0 %475
    %477 = vadd.xlane.f32.xlu0 %v446
    %v478 = vpop.xlane.xlu0 %477
    %479 = vadd.xlane.f32.xlu0 %v448
    %v480 = vpop.xlane.xlu0 %479
    %v481 = vlog2.pop %v450
    %v482 = vmul.f32 %v481, 0.6931472
    %v483 = vlog2.pop %v452
    %v484 = vmul.f32 %v483, 0.6931472
    %v485 = vlog2.pop %v454
    %v486 = vmul.f32 %v485, 0.6931472
    %v487 = vlog2.pop %v456
    %v488 = vmul.f32 %v487, 0.6931472
    %v489 = vlog2.pop %v458
    %v490 = vmul.f32 %v489, 0.6931472
    %v491 = vlog2.pop %v460
    %v492 = vmul.f32 %v491, 0.6931472
    %v493 = vlog2.pop %v462
    %v494 = vmul.f32 %v493, 0.6931472
    %v495 = vlog2.pop %v464
    %v496 = vmul.f32 %v495, 0.6931472
    %v497 = vlog2.pop %v466
    %v498 = vmul.f32 %v497, 0.6931472
    %v499 = vlog2.pop %v468
    %v500 = vmul.f32 %v499, 0.6931472
    %v501 = vlog2.pop %v470
    %v502 = vmul.f32 %v501, 0.6931472
    %v503 = vlog2.pop %v472
    %v504 = vmul.f32 %v503, 0.6931472
    %v505 = vlog2.pop %v474
    %v506 = vmul.f32 %v505, 0.6931472
    %v507 = vlog2.pop %v476
    %v508 = vmul.f32 %v507, 0.6931472
    %v509 = vlog2.pop %v478
    %v510 = vmul.f32 %v509, 0.6931472
    %v511 = vlog2.pop %v480
    %v512 = vmul.f32 %v511, 0.6931472
    %v513 = vsub.f32 %v401, %v482
    %v514 = vsub.f32 %v402, %v484
    %v515 = vsub.f32 %v403, %v486
    %v516 = vsub.f32 %v404, %v488
    %v517 = vsub.f32 %v405, %v490
    %v518 = vsub.f32 %v406, %v492
    %v519 = vsub.f32 %v407, %v494
    %v520 = vsub.f32 %v408, %v496
    %v521 = vsub.f32 %v409, %v498
    %v522 = vsub.f32 %v410, %v500
    %v523 = vsub.f32 %v411, %v502
    %v524 = vsub.f32 %v412, %v504
    %v525 = vsub.f32 %v413, %v506
    %v526 = vsub.f32 %v414, %v508
    %v527 = vsub.f32 %v415, %v510
    %v528 = vsub.f32 %v416, %v512
    %529 = vst [vmem:[%s3] sm:$0xff] %v513
    %530 = vst [vmem:[%s3 + $0x8] sm:$0xff] %v514
    %531 = vst [vmem:[%s3 + $0x10] sm:$0xff] %v515
    %532 = vst [vmem:[%s3 + $0x18] sm:$0xff] %v516
    %533 = vst [vmem:[%s3 + $0x20] sm:$0xff] %v517
    %534 = vst [vmem:[%s3 + $0x28] sm:$0xff] %v518
    %535 = vst [vmem:[%s3 + $0x30] sm:$0xff] %v519
    %536 = vst [vmem:[%s3 + $0x38] sm:$0xff] %v520
    %537 = vst [vmem:[%s3 + $0x40] sm:$0xff] %v521
    %538 = vst [vmem:[%s3 + $0x48] sm:$0xff] %v522
    %539 = vst [vmem:[%s3 + $0x50] sm:$0xff] %v523
    %540 = vst [vmem:[%s3 + $0x58] sm:$0xff] %v524
    %541 = vst [vmem:[%s3 + $0x60] sm:$0xff] %v525
    %542 = vst [vmem:[%s3 + $0x68] sm:$0xff] %v526
    %543 = vst [vmem:[%s3 + $0x70] sm:$0xff] %v527
    %544 = vst [vmem:[%s3 + $0x78] sm:$0xff] %v528
  $region21: #{gnn_forward_dense.3} parent=0 // pred_fallthru
    _
  // Predicated region
  $region22: #{gnn_forward_dense.3} parent=0 // pred_check
    _
  $region23: #{gnn_forward_dense.3} parent=0 // pred_check_branch
    %546 = sbr.rel (0) target = $region25
  $region24: #{gnn_forward_dense.3} parent=0 // pred_region
    _
  $region25: #{gnn_forward_dense.3} parent=0 // pred_fallthru
    _
  // Predicated region
  $region26: #{gnn_forward_dense.3} parent=0 // pred_check
    _
  $region27: #{gnn_forward_dense.3} parent=0 // pred_check_branch
    %548 = sbr.rel (0) target = $region29
  $region28: #{gnn_forward_dense.3} parent=0 // pred_region
    _
  $region29: #{gnn_forward_dense.3} parent=0 // pred_fallthru
    _

// kernel: gnn_forward_dense.2
$region0: #{gnn_forward_dense.2}
  #allocation0 [shape = 'u32[]', space=smem, size = 0x4, offset = 0x4, fixed_abs, tag = 'smem constant byte address 0x4 - core index']
  #allocation1 [shape = 'u32[144,128]{1,0:T(1,128)}', space=vmem, size = 0x12000, scoped, tag = 'internal scratch']
  #allocation2 [shape = 'f32[128,128]{1,0:T(8,128)}', space=vmem, size = 0x10000, scoped, tag = 'scratch operand']
  %s0 = inlined_call_operand.vmem [shape: bf16[128,128], index: 0, kind: input, shape index: {}]
  %s1 = inlined_call_operand.vmem [shape: bf16[128,128], index: 1, kind: input, shape index: {}]
  %s2 = inlined_call_operand.vmem [shape: f32[128,128], index: 2, kind: input, shape index: {}]
  %s3 = inlined_call_operand.vmem [shape: f32[1,128], index: 3, kind: input, shape index: {}]
  %s4 = inlined_call_operand.vmem [shape: f32[128,128], index: 4, kind: input, shape index: {}]
  %s5 = inlined_call_operand.vmem [shape: bf16[128,128], index: 5, kind: output, shape index: {}]
  %s6 = sld [smem:[#allocation0]]
  $region38: #{gnn_forward_dense.2} parent=0
    _
  %s8 = ssub.s32 1, %s6
  %s9 = scalar_select 0, %s8, %s6
  // Predicated region
  $region2: #{gnn_forward_dense.2} parent=0 // pred_check
    _
  $region3: #{gnn_forward_dense.2} parent=0 // pred_check_branch
    %11 = sbr.rel (0) target = $region5
  $region4: #{gnn_forward_dense.2} parent=0 // pred_region
    _
  $region5: #{gnn_forward_dense.2} parent=0 // pred_fallthru
    _
  // Predicated region
  $region6: #{gnn_forward_dense.2} parent=0 // pred_check
    _
  $region7: #{gnn_forward_dense.2} parent=0 // pred_check_branch
    %13 = sbr.rel (0) target = $region9
  $region8: #{gnn_forward_dense.2} parent=0 // pred_region
    _
  $region9: #{gnn_forward_dense.2} parent=0 // pred_fallthru
    _
  // Predicated region
  $region10: #{gnn_forward_dense.2} parent=0 // pred_check
    _
  $region11: #{gnn_forward_dense.2} parent=0 // pred_check_branch
    %15 = sbr.rel (0) target = $region13
  $region12: #{gnn_forward_dense.2} parent=0 // pred_region
    _
  $region13: #{gnn_forward_dense.2} parent=0 // pred_fallthru
    _
  // Predicated region
  $region14: #{gnn_forward_dense.2} parent=0 // pred_check
    _
  $region15: #{gnn_forward_dense.2} parent=0 // pred_check_branch
    %17 = sbr.rel (0) target = $region17
  $region16: #{gnn_forward_dense.2} parent=0 // pred_region
    _
  $region17: #{gnn_forward_dense.2} parent=0 // pred_fallthru
    _
  // Predicated region
  $region18: #{gnn_forward_dense.2} parent=0 // pred_check
    _
  $region19: #{gnn_forward_dense.2} parent=0 // pred_check_branch
    %19 = sbr.rel (0) target = $region21
  $region20: #{gnn_forward_dense.2} parent=0 // pred_region
    _
  $region21: #{gnn_forward_dense.2} parent=0 // pred_fallthru
    _
  %p21 = scmp.eq.s32.totalorder 0, 0
  // Predicated region
  $region22: #{gnn_forward_dense.2} parent=0 // pred_check
    %p22 = pneg %p21
  $region23: #{gnn_forward_dense.2} parent=0 // pred_check_branch
    %24 = sbr.rel (%p22) target = $region25
  $region24: #{gnn_forward_dense.2} parent=0 // pred_region
    %25 = vst [vmem:[#allocation2] sm:$0xff] 0.0
    %26 = vst [vmem:[#allocation2 + $0x8] sm:$0xff] 0.0
    %27 = vst [vmem:[#allocation2 + $0x10] sm:$0xff] 0.0
    %28 = vst [vmem:[#allocation2 + $0x18] sm:$0xff] 0.0
    %29 = vst [vmem:[#allocation2 + $0x20] sm:$0xff] 0.0
    %30 = vst [vmem:[#allocation2 + $0x28] sm:$0xff] 0.0
    %31 = vst [vmem:[#allocation2 + $0x30] sm:$0xff] 0.0
    %32 = vst [vmem:[#allocation2 + $0x38] sm:$0xff] 0.0
    %33 = vst [vmem:[#allocation2 + $0x40] sm:$0xff] 0.0
    %34 = vst [vmem:[#allocation2 + $0x48] sm:$0xff] 0.0
    %35 = vst [vmem:[#allocation2 + $0x50] sm:$0xff] 0.0
    %36 = vst [vmem:[#allocation2 + $0x58] sm:$0xff] 0.0
    %37 = vst [vmem:[#allocation2 + $0x60] sm:$0xff] 0.0
    %38 = vst [vmem:[#allocation2 + $0x68] sm:$0xff] 0.0
    %39 = vst [vmem:[#allocation2 + $0x70] sm:$0xff] 0.0
    %40 = vst [vmem:[#allocation2 + $0x78] sm:$0xff] 0.0
  $region25: #{gnn_forward_dense.2} parent=0 // pred_fallthru
    _
  %v41 = vld [vmem:[#allocation2] sm:$0xff]
  %v42 = vld [vmem:[#allocation2 + $0x8] sm:$0xff]
  %v43 = vld [vmem:[#allocation2 + $0x10] sm:$0xff]
  %v44 = vld [vmem:[#allocation2 + $0x18] sm:$0xff]
  %v45 = vld [vmem:[#allocation2 + $0x20] sm:$0xff]
  %v46 = vld [vmem:[#allocation2 + $0x28] sm:$0xff]
  %v47 = vld [vmem:[#allocation2 + $0x30] sm:$0xff]
  %v48 = vld [vmem:[#allocation2 + $0x38] sm:$0xff]
  %v49 = vld [vmem:[#allocation2 + $0x40] sm:$0xff]
  %v50 = vld [vmem:[#allocation2 + $0x48] sm:$0xff]
  %v51 = vld [vmem:[#allocation2 + $0x50] sm:$0xff]
  %v52 = vld [vmem:[#allocation2 + $0x58] sm:$0xff]
  %v53 = vld [vmem:[#allocation2 + $0x60] sm:$0xff]
  %v54 = vld [vmem:[#allocation2 + $0x68] sm:$0xff]
  %v55 = vld [vmem:[#allocation2 + $0x70] sm:$0xff]
  %v56 = vld [vmem:[#allocation2 + $0x78] sm:$0xff]
  %v57 = vld [vmem:[%s0] sm:$0xf]
  %v58 = vld [vmem:[%s0 + $0x4] sm:$0xf]
  %v59 = vld [vmem:[%s0 + $0x8] sm:$0xf]
  %v60 = vld [vmem:[%s0 + $0xc] sm:$0xf]
  %v61 = vld [vmem:[%s0 + $0x10] sm:$0xf]
  %v62 = vld [vmem:[%s0 + $0x14] sm:$0xf]
  %v63 = vld [vmem:[%s0 + $0x18] sm:$0xf]
  %v64 = vld [vmem:[%s0 + $0x1c] sm:$0xf]
  %v65 = vld [vmem:[%s0 + $0x20] sm:$0xf]
  %v66 = vld [vmem:[%s0 + $0x24] sm:$0xf]
  %v67 = vld [vmem:[%s0 + $0x28] sm:$0xf]
  %v68 = vld [vmem:[%s0 + $0x2c] sm:$0xf]
  %v69 = vld [vmem:[%s0 + $0x30] sm:$0xf]
  %v70 = vld [vmem:[%s0 + $0x34] sm:$0xf]
  %v71 = vld [vmem:[%s0 + $0x38] sm:$0xf]
  %v72 = vld [vmem:[%s0 + $0x3c] sm:$0xf]
  %v73 = vld [vmem:[%s1] sm:$0xf]
  %v74 = vld [vmem:[%s1 + $0x4] sm:$0xf]
  %v75 = vld [vmem:[%s1 + $0x8] sm:$0xf]
  %v76 = vld [vmem:[%s1 + $0xc] sm:$0xf]
  %v77 = vld [vmem:[%s1 + $0x10] sm:$0xf]
  %v78 = vld [vmem:[%s1 + $0x14] sm:$0xf]
  %v79 = vld [vmem:[%s1 + $0x18] sm:$0xf]
  %v80 = vld [vmem:[%s1 + $0x1c] sm:$0xf]
  %v81 = vld [vmem:[%s1 + $0x20] sm:$0xf]
  %v82 = vld [vmem:[%s1 + $0x24] sm:$0xf]
  %v83 = vld [vmem:[%s1 + $0x28] sm:$0xf]
  %v84 = vld [vmem:[%s1 + $0x2c] sm:$0xf]
  %v85 = vld [vmem:[%s1 + $0x30] sm:$0xf]
  %v86 = vld [vmem:[%s1 + $0x34] sm:$0xf]
  %v87 = vld [vmem:[%s1 + $0x38] sm:$0xf]
  %v88 = vld [vmem:[%s1 + $0x3c] sm:$0xf]
  %v105 = vunpack.c.l.b16 %v57
  %v106 = vunpack.c.l.b16 %v58
  %v107 = vunpack.c.l.b16 %v59
  %v108 = vunpack.c.l.b16 %v60
  %v109 = vunpack.c.l.b16 %v61
  %v110 = vunpack.c.l.b16 %v62
  %v111 = vunpack.c.l.b16 %v63
  %v112 = vunpack.c.l.b16 %v64
  %v113 = vunpack.c.l.b16 %v65
  %v114 = vunpack.c.l.b16 %v66
  %v115 = vunpack.c.l.b16 %v67
  %v116 = vunpack.c.l.b16 %v68
  %v117 = vunpack.c.l.b16 %v69
  %v118 = vunpack.c.l.b16 %v70
  %v119 = vunpack.c.l.b16 %v71
  %v120 = vunpack.c.l.b16 %v72
  %v121 = vpack.c.b16 %v106, %v105
  %v122 = vpack.c.b16 %v108, %v107
  %v123 = vpack.c.b16 %v110, %v109
  %v124 = vpack.c.b16 %v112, %v111
  %v125 = vpack.c.b16 %v114, %v113
  %v126 = vpack.c.b16 %v116, %v115
  %v127 = vpack.c.b16 %v118, %v117
  %v128 = vpack.c.b16 %v120, %v119
  %v153 = vunpack.c.l.b16 %v73
  %v154 = vunpack.c.l.b16 %v74
  %v155 = vunpack.c.l.b16 %v75
  %v156 = vunpack.c.l.b16 %v76
  %v157 = vunpack.c.l.b16 %v77
  %v158 = vunpack.c.l.b16 %v78
  %v159 = vunpack.c.l.b16 %v79
  %v160 = vunpack.c.l.b16 %v80
  %v161 = vunpack.c.l.b16 %v81
  %v162 = vunpack.c.l.b16 %v82
  %v163 = vunpack.c.l.b16 %v83
  %v164 = vunpack.c.l.b16 %v84
  %v165 = vunpack.c.l.b16 %v85
  %v166 = vunpack.c.l.b16 %v86
  %v167 = vunpack.c.l.b16 %v87
  %v168 = vunpack.c.l.b16 %v88
  %v169 = vpack.c.b16 %v154, %v153
  %v170 = vpack.c.b16 %v156, %v155
  %v171 = vpack.c.b16 %v158, %v157
  %v172 = vpack.c.b16 %v160, %v159
  %v173 = vpack.c.b16 %v162, %v161
  %v174 = vpack.c.b16 %v164, %v163
  %v175 = vpack.c.b16 %v166, %v165
  %v176 = vpack.c.b16 %v168, %v167
  %185 = vmatprep.subr.bf16.mxu0 0
  %186 = vmatpush1.bf16.msra.mxu0 %v176
  %187 = vmatprep.subr.bf16.mxu0 0
  %188 = vmatpush1.bf16.msra.mxu0 %v175
  %189 = vmatprep.subr.bf16.mxu0 0
  %190 = vmatpush1.bf16.msra.mxu0 %v174
  %191 = vmatprep.subr.bf16.mxu0 0
  %192 = vmatpush1.bf16.msra.mxu0 %v173
  %193 = vmatprep.subr.bf16.mxu0 0
  %194 = vmatpush1.bf16.msra.mxu0 %v172
  %195 = vmatprep.subr.bf16.mxu0 0
  %196 = vmatpush1.bf16.msra.mxu0 %v171
  %197 = vmatprep.subr.bf16.mxu0 0
  %198 = vmatpush1.bf16.msra.mxu0 %v170
  %199 = vmatprep.subr.bf16.mxu0 0
  %200 = vmatpush1.bf16.msra.mxu0 %v169
  %201 = vmatprep.subr.bf16.mxu0 0
  %202 = vmatpush2.bf16.msra.mxu0 0
  %203 = vmatprep.subr.bf16.mxu0 0
  %204 = vmatpush2.bf16.msra.mxu0 0
  %205 = vmatprep.subr.bf16.mxu0 0
  %206 = vmatpush2.bf16.msra.mxu0 0
  %207 = vmatprep.subr.bf16.mxu0 0
  %208 = vmatpush2.bf16.msra.mxu0 0
  %209 = vmatprep.subr.bf16.mxu0 0
  %210 = vmatpush2.bf16.msra.mxu0 0
  %211 = vmatprep.subr.bf16.mxu0 0
  %212 = vmatpush2.bf16.msra.mxu0 0
  %213 = vmatprep.subr.bf16.mxu0 0
  %214 = vmatpush2.bf16.msra.mxu0 0
  %215 = vmatprep.subr.bf16.mxu0 0
  %216 = vmatpush2.bf16.msra.mxu0 0
  %217 = vmatprep.mubr.bf16.mxu0 0
  %218 = vmatmul.mubr.bf16.gmra.mxu0 %v121
  %v219 = vpop.f32.mrf.mxu0
  %v220 = vadd.f32 0.0, %v219
  %v221 = vpop.f32.mrf.mxu0
  %v222 = vpop.f32.mrf.mxu0
  %v223 = vadd.f32 0.0, %v222
  %v224 = vpop.f32.mrf.mxu0
  %225 = vmatprep.mubr.bf16.mxu0 0
  %226 = vmatmul.mubr.bf16.gmra.mxu0 %v122
  %v227 = vpop.f32.mrf.mxu0
  %v228 = vadd.f32 0.0, %v227
  %v229 = vpop.f32.mrf.mxu0
  %v230 = vpop.f32.mrf.mxu0
  %v231 = vadd.f32 0.0, %v230
  %v232 = vpop.f32.mrf.mxu0
  %233 = vmatprep.mubr.bf16.mxu0 0
  %234 = vmatmul.mubr.bf16.gmra.mxu0 %v123
  %v235 = vpop.f32.mrf.mxu0
  %v236 = vadd.f32 0.0, %v235
  %v237 = vpop.f32.mrf.mxu0
  %v238 = vpop.f32.mrf.mxu0
  %v239 = vadd.f32 0.0, %v238
  %v240 = vpop.f32.mrf.mxu0
  %241 = vmatprep.mubr.bf16.mxu0 0
  %242 = vmatmul.mubr.bf16.gmra.mxu0 %v124
  %v243 = vpop.f32.mrf.mxu0
  %v244 = vadd.f32 0.0, %v243
  %v245 = vpop.f32.mrf.mxu0
  %v246 = vpop.f32.mrf.mxu0
  %v247 = vadd.f32 0.0, %v246
  %v248 = vpop.f32.mrf.mxu0
  %249 = vmatprep.mubr.bf16.mxu0 0
  %250 = vmatmul.mubr.bf16.gmra.mxu0 %v125
  %v251 = vpop.f32.mrf.mxu0
  %v252 = vadd.f32 0.0, %v251
  %v253 = vpop.f32.mrf.mxu0
  %v254 = vpop.f32.mrf.mxu0
  %v255 = vadd.f32 0.0, %v254
  %v256 = vpop.f32.mrf.mxu0
  %257 = vmatprep.mubr.bf16.mxu0 0
  %258 = vmatmul.mubr.bf16.gmra.mxu0 %v126
  %v259 = vpop.f32.mrf.mxu0
  %v260 = vadd.f32 0.0, %v259
  %v261 = vpop.f32.mrf.mxu0
  %v262 = vpop.f32.mrf.mxu0
  %v263 = vadd.f32 0.0, %v262
  %v264 = vpop.f32.mrf.mxu0
  %265 = vmatprep.mubr.bf16.mxu0 0
  %266 = vmatmul.mubr.bf16.gmra.mxu0 %v127
  %v267 = vpop.f32.mrf.mxu0
  %v268 = vadd.f32 0.0, %v267
  %v269 = vpop.f32.mrf.mxu0
  %v270 = vpop.f32.mrf.mxu0
  %v271 = vadd.f32 0.0, %v270
  %v272 = vpop.f32.mrf.mxu0
  %273 = vmatprep.mubr.bf16.mxu0 0
  %274 = vmatmul.mubr.bf16.gmra.mxu0 %v128
  %v275 = vpop.f32.mrf.mxu0
  %v276 = vadd.f32 0.0, %v275
  %v277 = vpop.f32.mrf.mxu0
  %v278 = vpop.f32.mrf.mxu0
  %v279 = vadd.f32 0.0, %v278
  %v280 = vpop.f32.mrf.mxu0
  %281 = vdwg.mxu0
  %v282 = vadd.f32 %v41, %v220
  %v283 = vadd.f32 %v42, %v223
  %v284 = vadd.f32 %v43, %v228
  %v285 = vadd.f32 %v44, %v231
  %v286 = vadd.f32 %v45, %v236
  %v287 = vadd.f32 %v46, %v239
  %v288 = vadd.f32 %v47, %v244
  %v289 = vadd.f32 %v48, %v247
  %v290 = vadd.f32 %v49, %v252
  %v291 = vadd.f32 %v50, %v255
  %v292 = vadd.f32 %v51, %v260
  %v293 = vadd.f32 %v52, %v263
  %v294 = vadd.f32 %v53, %v268
  %v295 = vadd.f32 %v54, %v271
  %v296 = vadd.f32 %v55, %v276
  %v297 = vadd.f32 %v56, %v279
  %298 = vst [vmem:[#allocation2] sm:$0xff] %v282
  %299 = vst [vmem:[#allocation2 + $0x8] sm:$0xff] %v283
  %300 = vst [vmem:[#allocation2 + $0x10] sm:$0xff] %v284
  %301 = vst [vmem:[#allocation2 + $0x18] sm:$0xff] %v285
  %302 = vst [vmem:[#allocation2 + $0x20] sm:$0xff] %v286
  %303 = vst [vmem:[#allocation2 + $0x28] sm:$0xff] %v287
  %304 = vst [vmem:[#allocation2 + $0x30] sm:$0xff] %v288
  %305 = vst [vmem:[#allocation2 + $0x38] sm:$0xff] %v289
  %306 = vst [vmem:[#allocation2 + $0x40] sm:$0xff] %v290
  %307 = vst [vmem:[#allocation2 + $0x48] sm:$0xff] %v291
  %308 = vst [vmem:[#allocation2 + $0x50] sm:$0xff] %v292
  %309 = vst [vmem:[#allocation2 + $0x58] sm:$0xff] %v293
  %310 = vst [vmem:[#allocation2 + $0x60] sm:$0xff] %v294
  %311 = vst [vmem:[#allocation2 + $0x68] sm:$0xff] %v295
  %312 = vst [vmem:[#allocation2 + $0x70] sm:$0xff] %v296
  %313 = vst [vmem:[#allocation2 + $0x78] sm:$0xff] %v297
  // Predicated region
  $region26: #{gnn_forward_dense.2} parent=0 // pred_check
    %p314 = pneg %p21
  $region27: #{gnn_forward_dense.2} parent=0 // pred_check_branch
    %316 = sbr.rel (%p314) target = $region29
  $region28: #{gnn_forward_dense.2} parent=0 // pred_region
    %v317 = vld [vmem:[#allocation2] sm:$0xff]
    %v318 = vld [vmem:[#allocation2 + $0x8] sm:$0xff]
    %v319 = vld [vmem:[#allocation2 + $0x10] sm:$0xff]
    %v320 = vld [vmem:[#allocation2 + $0x18] sm:$0xff]
    %v321 = vld [vmem:[#allocation2 + $0x20] sm:$0xff]
    %v322 = vld [vmem:[#allocation2 + $0x28] sm:$0xff]
    %v323 = vld [vmem:[#allocation2 + $0x30] sm:$0xff]
    %v324 = vld [vmem:[#allocation2 + $0x38] sm:$0xff]
    %v325 = vld [vmem:[#allocation2 + $0x40] sm:$0xff]
    %v326 = vld [vmem:[#allocation2 + $0x48] sm:$0xff]
    %v327 = vld [vmem:[#allocation2 + $0x50] sm:$0xff]
    %v328 = vld [vmem:[#allocation2 + $0x58] sm:$0xff]
    %v329 = vld [vmem:[#allocation2 + $0x60] sm:$0xff]
    %v330 = vld [vmem:[#allocation2 + $0x68] sm:$0xff]
    %v331 = vld [vmem:[#allocation2 + $0x70] sm:$0xff]
    %v332 = vld [vmem:[#allocation2 + $0x78] sm:$0xff]
    %v333 = vld [vmem:[%s2] sm:$0xff]
    %v334 = vld [vmem:[%s2 + $0x8] sm:$0xff]
    %v335 = vld [vmem:[%s2 + $0x10] sm:$0xff]
    %v336 = vld [vmem:[%s2 + $0x18] sm:$0xff]
    %v337 = vld [vmem:[%s2 + $0x20] sm:$0xff]
    %v338 = vld [vmem:[%s2 + $0x28] sm:$0xff]
    %v339 = vld [vmem:[%s2 + $0x30] sm:$0xff]
    %v340 = vld [vmem:[%s2 + $0x38] sm:$0xff]
    %v341 = vld [vmem:[%s2 + $0x40] sm:$0xff]
    %v342 = vld [vmem:[%s2 + $0x48] sm:$0xff]
    %v343 = vld [vmem:[%s2 + $0x50] sm:$0xff]
    %v344 = vld [vmem:[%s2 + $0x58] sm:$0xff]
    %v345 = vld [vmem:[%s2 + $0x60] sm:$0xff]
    %v346 = vld [vmem:[%s2 + $0x68] sm:$0xff]
    %v347 = vld [vmem:[%s2 + $0x70] sm:$0xff]
    %v348 = vld [vmem:[%s2 + $0x78] sm:$0xff]
    %v349 = vld [vmem:[%s3] sm:$0x1]
    %v351 = vlaneseq
    %v352 = vshrl.u32 %v351, 7
    %v353 = vsub.s32 0, %v352
    %v354 = vrot.slane %v349, %v353
    %356 = vmatprep.subr.mxu0 0.0
    %357 = vmatpush1.msra.mxu0 %v348
    %358 = vmatprep.subr.mxu0 0.0
    %359 = vmatpush1.msra.mxu0 %v347
    %360 = vmatprep.subr.mxu0 0.0
    %361 = vmatpush1.msra.mxu0 %v346
    %362 = vmatprep.subr.mxu0 0.0
    %363 = vmatpush1.msra.mxu0 %v345
    %364 = vmatprep.subr.mxu0 0.0
    %365 = vmatpush1.msra.mxu0 %v344
    %366 = vmatprep.subr.mxu0 0.0
    %367 = vmatpush1.msra.mxu0 %v343
    %368 = vmatprep.subr.mxu0 0.0
    %369 = vmatpush1.msra.mxu0 %v342
    %370 = vmatprep.subr.mxu0 0.0
    %371 = vmatpush1.msra.mxu0 %v341
    %372 = vmatprep.subr.mxu0 0.0
    %373 = vmatpush1.msra.mxu0 %v340
    %374 = vmatprep.subr.mxu0 0.0
    %375 = vmatpush1.msra.mxu0 %v339
    %376 = vmatprep.subr.mxu0 0.0
    %377 = vmatpush1.msra.mxu0 %v338
    %378 = vmatprep.subr.mxu0 0.0
    %379 = vmatpush1.msra.mxu0 %v337
    %380 = vmatprep.subr.mxu0 0.0
    %381 = vmatpush1.msra.mxu0 %v336
    %382 = vmatprep.subr.mxu0 0.0
    %383 = vmatpush1.msra.mxu0 %v335
    %384 = vmatprep.subr.mxu0 0.0
    %385 = vmatpush1.msra.mxu0 %v334
    %386 = vmatprep.subr.mxu0 0.0
    %387 = vmatpush1.msra.mxu0 %v333
    %388 = vmatprep.subr.mxu0 0.0
    %389 = vmatpush2.msra.mxu0 0.0
    %390 = vmatprep.subr.mxu0 0.0
    %391 = vmatpush2.msra.mxu0 0.0
    %392 = vmatprep.subr.mxu0 0.0
    %393 = vmatpush2.msra.mxu0 0.0
    %394 = vmatprep.subr.mxu0 0.0
    %395 = vmatpush2.msra.mxu0 0.0
    %396 = vmatprep.subr.mxu0 0.0
    %397 = vmatpush2.msra.mxu0 0.0
    %398 = vmatprep.subr.mxu0 0.0
    %399 = vmatpush2.msra.mxu0 0.0
    %400 = vmatprep.subr.mxu0 0.0
    %401 = vmatpush2.msra.mxu0 0.0
    %402 = vmatprep.subr.mxu0 0.0
    %403 = vmatpush2.msra.mxu0 0.0
    %404 = vmatprep.subr.mxu0 0.0
    %405 = vmatpush2.msra.mxu0 0.0
    %406 = vmatprep.subr.mxu0 0.0
    %407 = vmatpush2.msra.mxu0 0.0
    %408 = vmatprep.subr.mxu0 0.0
    %409 = vmatpush2.msra.mxu0 0.0
    %410 = vmatprep.subr.mxu0 0.0
    %411 = vmatpush2.msra.mxu0 0.0
    %412 = vmatprep.subr.mxu0 0.0
    %413 = vmatpush2.msra.mxu0 0.0
    %414 = vmatprep.subr.mxu0 0.0
    %415 = vmatpush2.msra.mxu0 0.0
    %416 = vmatprep.subr.mxu0 0.0
    %417 = vmatpush2.msra.mxu0 0.0
    %418 = vmatprep.subr.mxu0 0.0
    %419 = vmatpush2.msra.mxu0 0.0
    %420 = vmatprep.mubr.f32.mxu0 0.0
    %421 = vmatmul.mubr.f32.gmra.mxu0 %v317
    %v422 = vpop.f32.mrf.mxu0
    %v423 = vadd.f32 %v354, %v422
    %v424 = vpop.f32.mrf.mxu0
    %425 = vmatprep.mubr.f32.mxu0 0.0
    %426 = vmatmul.mubr.f32.gmra.mxu0 %v318
    %v427 = vpop.f32.mrf.mxu0
    %v428 = vadd.f32 %v354, %v427
    %v429 = vpop.f32.mrf.mxu0
    %430 = vmatprep.mubr.f32.mxu0 0.0
    %431 = vmatmul.mubr.f32.gmra.mxu0 %v319
    %v432 = vpop.f32.mrf.mxu0
    %v433 = vadd.f32 %v354, %v432
    %v434 = vpop.f32.mrf.mxu0
    %435 = vmatprep.mubr.f32.mxu0 0.0
    %436 = vmatmul.mubr.f32.gmra.mxu0 %v320
    %v437 = vpop.f32.mrf.mxu0
    %v438 = vadd.f32 %v354, %v437
    %v439 = vpop.f32.mrf.mxu0
    %440 = vmatprep.mubr.f32.mxu0 0.0
    %441 = vmatmul.mubr.f32.gmra.mxu0 %v321
    %v442 = vpop.f32.mrf.mxu0
    %v443 = vadd.f32 %v354, %v442
    %v444 = vpop.f32.mrf.mxu0
    %445 = vmatprep.mubr.f32.mxu0 0.0
    %446 = vmatmul.mubr.f32.gmra.mxu0 %v322
    %v447 = vpop.f32.mrf.mxu0
    %v448 = vadd.f32 %v354, %v447
    %v449 = vpop.f32.mrf.mxu0
    %450 = vmatprep.mubr.f32.mxu0 0.0
    %451 = vmatmul.mubr.f32.gmra.mxu0 %v323
    %v452 = vpop.f32.mrf.mxu0
    %v453 = vadd.f32 %v354, %v452
    %v454 = vpop.f32.mrf.mxu0
    %455 = vmatprep.mubr.f32.mxu0 0.0
    %456 = vmatmul.mubr.f32.gmra.mxu0 %v324
    %v457 = vpop.f32.mrf.mxu0
    %v458 = vadd.f32 %v354, %v457
    %v459 = vpop.f32.mrf.mxu0
    %460 = vmatprep.mubr.f32.mxu0 0.0
    %461 = vmatmul.mubr.f32.gmra.mxu0 %v325
    %v462 = vpop.f32.mrf.mxu0
    %v463 = vadd.f32 %v354, %v462
    %v464 = vpop.f32.mrf.mxu0
    %465 = vmatprep.mubr.f32.mxu0 0.0
    %466 = vmatmul.mubr.f32.gmra.mxu0 %v326
    %v467 = vpop.f32.mrf.mxu0
    %v468 = vadd.f32 %v354, %v467
    %v469 = vpop.f32.mrf.mxu0
    %470 = vmatprep.mubr.f32.mxu0 0.0
    %471 = vmatmul.mubr.f32.gmra.mxu0 %v327
    %v472 = vpop.f32.mrf.mxu0
    %v473 = vadd.f32 %v354, %v472
    %v474 = vpop.f32.mrf.mxu0
    %475 = vmatprep.mubr.f32.mxu0 0.0
    %476 = vmatmul.mubr.f32.gmra.mxu0 %v328
    %v477 = vpop.f32.mrf.mxu0
    %v478 = vadd.f32 %v354, %v477
    %v479 = vpop.f32.mrf.mxu0
    %480 = vmatprep.mubr.f32.mxu0 0.0
    %481 = vmatmul.mubr.f32.gmra.mxu0 %v329
    %v482 = vpop.f32.mrf.mxu0
    %v483 = vadd.f32 %v354, %v482
    %v484 = vpop.f32.mrf.mxu0
    %485 = vmatprep.mubr.f32.mxu0 0.0
    %486 = vmatmul.mubr.f32.gmra.mxu0 %v330
    %v487 = vpop.f32.mrf.mxu0
    %v488 = vadd.f32 %v354, %v487
    %v489 = vpop.f32.mrf.mxu0
    %490 = vmatprep.mubr.f32.mxu0 0.0
    %491 = vmatmul.mubr.f32.gmra.mxu0 %v331
    %v492 = vpop.f32.mrf.mxu0
    %v493 = vadd.f32 %v354, %v492
    %v494 = vpop.f32.mrf.mxu0
    %495 = vmatprep.mubr.f32.mxu0 0.0
    %496 = vmatmul.mubr.f32.gmra.mxu0 %v332
    %v497 = vpop.f32.mrf.mxu0
    %v498 = vadd.f32 %v354, %v497
    %v499 = vpop.f32.mrf.mxu0
    %500 = vdwg.mxu0
    %v501 = vmax.f32 %v423, 0.0
    %v502 = vmax.f32 %v428, 0.0
    %v503 = vmax.f32 %v433, 0.0
    %v504 = vmax.f32 %v438, 0.0
    %v505 = vmax.f32 %v443, 0.0
    %v506 = vmax.f32 %v448, 0.0
    %v507 = vmax.f32 %v453, 0.0
    %v508 = vmax.f32 %v458, 0.0
    %v509 = vmax.f32 %v463, 0.0
    %v510 = vmax.f32 %v468, 0.0
    %v511 = vmax.f32 %v473, 0.0
    %v512 = vmax.f32 %v478, 0.0
    %v513 = vmax.f32 %v483, 0.0
    %v514 = vmax.f32 %v488, 0.0
    %v515 = vmax.f32 %v493, 0.0
    %v516 = vmax.f32 %v498, 0.0
    %v517 = vld [vmem:[%s4] sm:$0xff]
    %v518 = vld [vmem:[%s4 + $0x8] sm:$0xff]
    %v519 = vld [vmem:[%s4 + $0x10] sm:$0xff]
    %v520 = vld [vmem:[%s4 + $0x18] sm:$0xff]
    %v521 = vld [vmem:[%s4 + $0x20] sm:$0xff]
    %v522 = vld [vmem:[%s4 + $0x28] sm:$0xff]
    %v523 = vld [vmem:[%s4 + $0x30] sm:$0xff]
    %v524 = vld [vmem:[%s4 + $0x38] sm:$0xff]
    %v525 = vld [vmem:[%s4 + $0x40] sm:$0xff]
    %v526 = vld [vmem:[%s4 + $0x48] sm:$0xff]
    %v527 = vld [vmem:[%s4 + $0x50] sm:$0xff]
    %v528 = vld [vmem:[%s4 + $0x58] sm:$0xff]
    %v529 = vld [vmem:[%s4 + $0x60] sm:$0xff]
    %v530 = vld [vmem:[%s4 + $0x68] sm:$0xff]
    %v531 = vld [vmem:[%s4 + $0x70] sm:$0xff]
    %v532 = vld [vmem:[%s4 + $0x78] sm:$0xff]
    %533 = vmatprep.subr.mxu0 0.0
    %534 = vmatpush1.msra.mxu0 %v532
    %535 = vmatprep.subr.mxu0 0.0
    %536 = vmatpush1.msra.mxu0 %v531
    %537 = vmatprep.subr.mxu0 0.0
    %538 = vmatpush1.msra.mxu0 %v530
    %539 = vmatprep.subr.mxu0 0.0
    %540 = vmatpush1.msra.mxu0 %v529
    %541 = vmatprep.subr.mxu0 0.0
    %542 = vmatpush1.msra.mxu0 %v528
    %543 = vmatprep.subr.mxu0 0.0
    %544 = vmatpush1.msra.mxu0 %v527
    %545 = vmatprep.subr.mxu0 0.0
    %546 = vmatpush1.msra.mxu0 %v526
    %547 = vmatprep.subr.mxu0 0.0
    %548 = vmatpush1.msra.mxu0 %v525
    %549 = vmatprep.subr.mxu0 0.0
    %550 = vmatpush1.msra.mxu0 %v524
    %551 = vmatprep.subr.mxu0 0.0
    %552 = vmatpush1.msra.mxu0 %v523
    %553 = vmatprep.subr.mxu0 0.0
    %554 = vmatpush1.msra.mxu0 %v522
    %555 = vmatprep.subr.mxu0 0.0
    %556 = vmatpush1.msra.mxu0 %v521
    %557 = vmatprep.subr.mxu0 0.0
    %558 = vmatpush1.msra.mxu0 %v520
    %559 = vmatprep.subr.mxu0 0.0
    %560 = vmatpush1.msra.mxu0 %v519
    %561 = vmatprep.subr.mxu0 0.0
    %562 = vmatpush1.msra.mxu0 %v518
    %563 = vmatprep.subr.mxu0 0.0
    %564 = vmatpush1.msra.mxu0 %v517
    %565 = vmatprep.subr.mxu0 0.0
    %566 = vmatpush2.msra.mxu0 0.0
    %567 = vmatprep.subr.mxu0 0.0
    %568 = vmatpush2.msra.mxu0 0.0
    %569 = vmatprep.subr.mxu0 0.0
    %570 = vmatpush2.msra.mxu0 0.0
    %571 = vmatprep.subr.mxu0 0.0
    %572 = vmatpush2.msra.mxu0 0.0
    %573 = vmatprep.subr.mxu0 0.0
    %574 = vmatpush2.msra.mxu0 0.0
    %575 = vmatprep.subr.mxu0 0.0
    %576 = vmatpush2.msra.mxu0 0.0
    %577 = vmatprep.subr.mxu0 0.0
    %578 = vmatpush2.msra.mxu0 0.0
    %579 = vmatprep.subr.mxu0 0.0
    %580 = vmatpush2.msra.mxu0 0.0
    %581 = vmatprep.subr.mxu0 0.0
    %582 = vmatpush2.msra.mxu0 0.0
    %583 = vmatprep.subr.mxu0 0.0
    %584 = vmatpush2.msra.mxu0 0.0
    %585 = vmatprep.subr.mxu0 0.0
    %586 = vmatpush2.msra.mxu0 0.0
    %587 = vmatprep.subr.mxu0 0.0
    %588 = vmatpush2.msra.mxu0 0.0
    %589 = vmatprep.subr.mxu0 0.0
    %590 = vmatpush2.msra.mxu0 0.0
    %591 = vmatprep.subr.mxu0 0.0
    %592 = vmatpush2.msra.mxu0 0.0
    %593 = vmatprep.subr.mxu0 0.0
    %594 = vmatpush2.msra.mxu0 0.0
    %595 = vmatprep.subr.mxu0 0.0
    %596 = vmatpush2.msra.mxu0 0.0
    %597 = vmatprep.mubr.f32.mxu0 0.0
    %598 = vmatmul.mubr.f32.gmra.mxu0 %v501
    %v599 = vpop.f32.mrf.mxu0
    %v600 = vadd.f32 0.0, %v599
    %v601 = vpop.f32.mrf.mxu0
    %602 = vmatprep.mubr.f32.mxu0 0.0
    %603 = vmatmul.mubr.f32.gmra.mxu0 %v502
    %v604 = vpop.f32.mrf.mxu0
    %v605 = vadd.f32 0.0, %v604
    %v606 = vpop.f32.mrf.mxu0
    %607 = vmatprep.mubr.f32.mxu0 0.0
    %608 = vmatmul.mubr.f32.gmra.mxu0 %v503
    %v609 = vpop.f32.mrf.mxu0
    %v610 = vadd.f32 0.0, %v609
    %v611 = vpop.f32.mrf.mxu0
    %612 = vmatprep.mubr.f32.mxu0 0.0
    %613 = vmatmul.mubr.f32.gmra.mxu0 %v504
    %v614 = vpop.f32.mrf.mxu0
    %v615 = vadd.f32 0.0, %v614
    %v616 = vpop.f32.mrf.mxu0
    %617 = vmatprep.mubr.f32.mxu0 0.0
    %618 = vmatmul.mubr.f32.gmra.mxu0 %v505
    %v619 = vpop.f32.mrf.mxu0
    %v620 = vadd.f32 0.0, %v619
    %v621 = vpop.f32.mrf.mxu0
    %622 = vmatprep.mubr.f32.mxu0 0.0
    %623 = vmatmul.mubr.f32.gmra.mxu0 %v506
    %v624 = vpop.f32.mrf.mxu0
    %v625 = vadd.f32 0.0, %v624
    %v626 = vpop.f32.mrf.mxu0
    %627 = vmatprep.mubr.f32.mxu0 0.0
    %628 = vmatmul.mubr.f32.gmra.mxu0 %v507
    %v629 = vpop.f32.mrf.mxu0
    %v630 = vadd.f32 0.0, %v629
    %v631 = vpop.f32.mrf.mxu0
    %632 = vmatprep.mubr.f32.mxu0 0.0
    %633 = vmatmul.mubr.f32.gmra.mxu0 %v508
    %v634 = vpop.f32.mrf.mxu0
    %v635 = vadd.f32 0.0, %v634
    %v636 = vpop.f32.mrf.mxu0
    %637 = vmatprep.mubr.f32.mxu0 0.0
    %638 = vmatmul.mubr.f32.gmra.mxu0 %v509
    %v639 = vpop.f32.mrf.mxu0
    %v640 = vadd.f32 0.0, %v639
    %v641 = vpop.f32.mrf.mxu0
    %642 = vmatprep.mubr.f32.mxu0 0.0
    %643 = vmatmul.mubr.f32.gmra.mxu0 %v510
    %v644 = vpop.f32.mrf.mxu0
    %v645 = vadd.f32 0.0, %v644
    %v646 = vpop.f32.mrf.mxu0
    %647 = vmatprep.mubr.f32.mxu0 0.0
    %648 = vmatmul.mubr.f32.gmra.mxu0 %v511
    %v649 = vpop.f32.mrf.mxu0
    %v650 = vadd.f32 0.0, %v649
    %v651 = vpop.f32.mrf.mxu0
    %652 = vmatprep.mubr.f32.mxu0 0.0
    %653 = vmatmul.mubr.f32.gmra.mxu0 %v512
    %v654 = vpop.f32.mrf.mxu0
    %v655 = vadd.f32 0.0, %v654
    %v656 = vpop.f32.mrf.mxu0
    %657 = vmatprep.mubr.f32.mxu0 0.0
    %658 = vmatmul.mubr.f32.gmra.mxu0 %v513
    %v659 = vpop.f32.mrf.mxu0
    %v660 = vadd.f32 0.0, %v659
    %v661 = vpop.f32.mrf.mxu0
    %662 = vmatprep.mubr.f32.mxu0 0.0
    %663 = vmatmul.mubr.f32.gmra.mxu0 %v514
    %v664 = vpop.f32.mrf.mxu0
    %v665 = vadd.f32 0.0, %v664
    %v666 = vpop.f32.mrf.mxu0
    %667 = vmatprep.mubr.f32.mxu0 0.0
    %668 = vmatmul.mubr.f32.gmra.mxu0 %v515
    %v669 = vpop.f32.mrf.mxu0
    %v670 = vadd.f32 0.0, %v669
    %v671 = vpop.f32.mrf.mxu0
    %672 = vmatprep.mubr.f32.mxu0 0.0
    %673 = vmatmul.mubr.f32.gmra.mxu0 %v516
    %v674 = vpop.f32.mrf.mxu0
    %v675 = vadd.f32 0.0, %v674
    %v676 = vpop.f32.mrf.mxu0
    %677 = vdwg.mxu0
    %v678 = vpack.c.bf16 %v605, %v600
    %v679 = vpack.c.bf16 %v615, %v610
    %v680 = vpack.c.bf16 %v625, %v620
    %v681 = vpack.c.bf16 %v635, %v630
    %v682 = vpack.c.bf16 %v645, %v640
    %v683 = vpack.c.bf16 %v655, %v650
    %v684 = vpack.c.bf16 %v665, %v660
    %v685 = vpack.c.bf16 %v675, %v670
    %v694 = vunpack.c.l.b16 %v678
    %v695 = vunpack.c.h.b16 %v678
    %v696 = vunpack.c.l.b16 %v679
    %v697 = vunpack.c.h.b16 %v679
    %v698 = vunpack.c.l.b16 %v680
    %v699 = vunpack.c.h.b16 %v680
    %v700 = vunpack.c.l.b16 %v681
    %v701 = vunpack.c.h.b16 %v681
    %v702 = vunpack.c.l.b16 %v682
    %v703 = vunpack.c.h.b16 %v682
    %v704 = vunpack.c.l.b16 %v683
    %v705 = vunpack.c.h.b16 %v683
    %v706 = vunpack.c.l.b16 %v684
    %v707 = vunpack.c.h.b16 %v684
    %v708 = vunpack.c.l.b16 %v685
    %v709 = vunpack.c.h.b16 %v685
    %v710 = vpack.c.b16 %v694, %v694
    %v711 = vpack.c.b16 %v695, %v695
    %v712 = vpack.c.b16 %v696, %v696
    %v713 = vpack.c.b16 %v697, %v697
    %v714 = vpack.c.b16 %v698, %v698
    %v715 = vpack.c.b16 %v699, %v699
    %v716 = vpack.c.b16 %v700, %v700
    %v717 = vpack.c.b16 %v701, %v701
    %v718 = vpack.c.b16 %v702, %v702
    %v719 = vpack.c.b16 %v703, %v703
    %v720 = vpack.c.b16 %v704, %v704
    %v721 = vpack.c.b16 %v705, %v705
    %v722 = vpack.c.b16 %v706, %v706
    %v723 = vpack.c.b16 %v707, %v707
    %v724 = vpack.c.b16 %v708, %v708
    %v725 = vpack.c.b16 %v709, %v709
    %742 = vst [vmem:[%s5] sm:$0xf] %v710
    %743 = vst [vmem:[%s5 + $0x4] sm:$0xf] %v711
    %744 = vst [vmem:[%s5 + $0x8] sm:$0xf] %v712
    %745 = vst [vmem:[%s5 + $0xc] sm:$0xf] %v713
    %746 = vst [vmem:[%s5 + $0x10] sm:$0xf] %v714
    %747 = vst [vmem:[%s5 + $0x14] sm:$0xf] %v715
    %748 = vst [vmem:[%s5 + $0x18] sm:$0xf] %v716
    %749 = vst [vmem:[%s5 + $0x1c] sm:$0xf] %v717
    %750 = vst [vmem:[%s5 + $0x20] sm:$0xf] %v718
    %751 = vst [vmem:[%s5 + $0x24] sm:$0xf] %v719
    %752 = vst [vmem:[%s5 + $0x28] sm:$0xf] %v720
    %753 = vst [vmem:[%s5 + $0x2c] sm:$0xf] %v721
    %754 = vst [vmem:[%s5 + $0x30] sm:$0xf] %v722
    %755 = vst [vmem:[%s5 + $0x34] sm:$0xf] %v723
    %756 = vst [vmem:[%s5 + $0x38] sm:$0xf] %v724
    %757 = vst [vmem:[%s5 + $0x3c] sm:$0xf] %v725
  $region29: #{gnn_forward_dense.2} parent=0 // pred_fallthru
    _
  // Predicated region
  $region30: #{gnn_forward_dense.2} parent=0 // pred_check
    _
  $region31: #{gnn_forward_dense.2} parent=0 // pred_check_branch
    %759 = sbr.rel (0) target = $region33
  $region32: #{gnn_forward_dense.2} parent=0 // pred_region
    _
  $region33: #{gnn_forward_dense.2} parent=0 // pred_fallthru
    _
  // Predicated region
  $region34: #{gnn_forward_dense.2} parent=0 // pred_check
    _
  $region35: #{gnn_forward_dense.2} parent=0 // pred_check_branch
    %761 = sbr.rel (0) target = $region37
  $region36: #{gnn_forward_dense.2} parent=0 // pred_region
    _
  $region37: #{gnn_forward_dense.2} parent=0 // pred_fallthru
    _

</llo_original>
